<compile_context>
chip_gen: v5e
topology: v5e:2x2
jax: 0.10.0
libtpu: 0.0.40
codegen_flags: <defaults>
</compile_context>

<pallas_src>
import jax
import jax.numpy as jnp
from jax.experimental import pallas as pl
from jax.experimental.pallas import tpu as pltpu


_LANES = 128
_SUBLANES = 8
_VMEM_LIMIT_BYTES = 32 * 1024 * 1024      # explicit scoped-VMEM limit (fits v5e/v6e/v7x)


def _mlp_t_kernel(xt_ref, w1t_ref, b1_ref, w2t_ref, b2_ref, w3t_ref, b3_ref,
                  ot_ref):
    xt = xt_ref[...]                       # (D, tb)   batch on lanes
    w1t = w1t_ref[...]                     # (h, D)
    d = xt.shape[0]                        # static (D == 3)

    # ---- Layer 1: K = D = 3 -> VPU broadcast-MACs, b1 folded into init ----
    acc = b1_ref[...] + w1t[:, 0:1] * xt[0:1, :]        # (h,1)+(h,1)*(1,tb) -> (h,tb)
    for k in range(1, d):                               # static unroll over 3 features
        acc = acc + w1t[:, k:k + 1] * xt[k:k + 1, :]
    h1 = jnp.maximum(acc, 0.0)                          # (h, tb)

    # ---- Layer 2: h x h (32x32) on the MXU, f32 accumulation ----
    h2 = jnp.dot(w2t_ref[...], h1,
                 preferred_element_type=jnp.float32,
                 precision=jax.lax.Precision.HIGHEST) + b2_ref[...]
    h2 = jnp.maximum(h2, 0.0)                           # (h, tb)

    # ---- Layer 3: (D, h) @ (h, tb) -> lane-dense (D, tb) output ----
    ot_ref[...] = (jnp.dot(w3t_ref[...], h2,
                           preferred_element_type=jnp.float32,
                           precision=jax.lax.Precision.HIGHEST)
                   + b3_ref[...]).astype(ot_ref.dtype)


def _choose_block_b(B, h, target_lanes, vmem_budget_bytes):
    """Pick a lane-aligned batch tile: as large as the VMEM budget allows,
    clamped to the padded batch, with >=2 grid steps so v7x's 2 TCs get work."""
    padded128 = pl.cdiv(B, _LANES) * _LANES
    # Per-lane f32 VMEM cost: x^T + y^T (D padded to 8 sublanes, double
    # buffered) plus ~4 live (h, tb) f32 temporaries inside the kernel body.
    bytes_per_lane = (2 * 2 * _SUBLANES + 4 * h) * 4
    max_from_vmem = max(_LANES,
                        (vmem_budget_bytes // bytes_per_lane) // _LANES * _LANES)
    tgt = max(_LANES, min(target_lanes, max_from_vmem))

    n_steps = pl.cdiv(padded128, tgt)
    if padded128 >= 2 * _LANES:
        n_steps = max(n_steps, 2)          # keep both v7x TensorCores busy
    block_b = pl.cdiv(pl.cdiv(padded128, n_steps), _LANES) * _LANES
    padded_B = n_steps * block_b
    return block_b, padded_B, n_steps


def estimator_forward(x, params, *, target_block_b=16384):
    """x: (B, D) float32. params: dict of w1,b1,w2,b2,w3,b3 with (in,out) weights."""
    B, D = x.shape
    h = params["w1"].shape[1]

    block_b, padded_B, n_steps = _choose_block_b(
        B, h, target_block_b, vmem_budget_bytes=(3 * _VMEM_LIMIT_BYTES) // 4)
    pad = padded_B - B

    # Layout plumbing only: pad batch, transpose so the last (lane) dimension
    # is the batch.  allow_input_fusion below lets XLA fuse this producer into
    # the pallas_call's input instead of paying an extra HBM round trip.
    xt = jnp.pad(x, ((0, pad), (0, 0))).T            # (D, padded_B)
    w1t = params["w1"].T                             # (h, D)
    w2t = params["w2"].T                             # (h, h)
    w3t = params["w3"].T                             # (D, h)
    b1 = params["b1"].reshape(h, 1)
    b2 = params["b2"].reshape(h, 1)
    b3 = params["b3"].reshape(D, 1)

    full = lambda a: pl.BlockSpec(a.shape, lambda i: (0, 0))  # resident params

    # VMEM sanity (documents the budget the block chooser already enforced).
    weight_bytes = 4 * (w1t.size + w2t.size + w3t.size + b1.size + b2.size + b3.size)
    est_vmem = (2 * 2 * _SUBLANES + 4 * h) * 4 * block_b + 2 * weight_bytes
    assert est_vmem <= _VMEM_LIMIT_BYTES, "batch tile exceeds VMEM budget"

    flops = 2 * padded_B * (D * h + h * h + h * D)
    bytes_accessed = 2 * 4 * D * padded_B + weight_bytes   # x^T in + y^T out + params

    yt = pl.pallas_call(
        _mlp_t_kernel,
        out_shape=jax.ShapeDtypeStruct((D, padded_B), x.dtype),
        grid_spec=pltpu.PrefetchScalarGridSpec(
            num_scalar_prefetch=0,
            grid=(n_steps,),
            in_specs=[
                pl.BlockSpec((D, block_b), lambda i: (0, i)),   # x^T tile
                full(w1t), full(b1),
                full(w2t), full(b2),
                full(w3t), full(b3),
            ],
            out_specs=pl.BlockSpec((D, block_b), lambda i: (0, i)),
        ),
        compiler_params=pltpu.CompilerParams(
            dimension_semantics=("parallel",),        # shards grid across v7x's 2 TCs
            vmem_limit_bytes=_VMEM_LIMIT_BYTES,       # explicit, generation-safe limit
            allow_input_fusion=[True, False, False, False, False, False, False],
        ),
        cost_estimate=pl.CostEstimate(
            flops=int(flops), transcendentals=0, bytes_accessed=int(bytes_accessed)),
    )(xt, w1t, b1, w2t, b2, w3t, b3)

    return yt.T[:B]                                   # un-pad, back to (B, D)


def init_params(key, D, h):
    """Deterministic init mimicking nn.Linear default (uniform +/- 1/sqrt(fan_in))."""
    ks = jax.random.split(key, 6)

    def lin(kw, kb, fan_in, fan_out):
        bound = 1.0 / jnp.sqrt(jnp.float32(fan_in))
        w = jax.random.uniform(kw, (fan_in, fan_out), jnp.float32, -bound, bound)
        b = jax.random.uniform(kb, (fan_out,), jnp.float32, -bound, bound)
        return w, b

    w1, b1 = lin(ks[0], ks[1], D, h)
    w2, b2 = lin(ks[2], ks[3], h, h)
    w3, b3 = lin(ks[4], ks[5], h, D)
    return {"w1": w1, "b1": b1, "w2": w2, "b2": b2, "w3": w3, "b3": b3}


def _reference(x, p):
    h1 = jnp.maximum(x @ p["w1"] + p["b1"], 0.0)
    h2 = jnp.maximum(h1 @ p["w2"] + p["b2"], 0.0)
    return h2 @ p["w3"] + p["b3"]


if __name__ == "__main__":
    # Full f32 matmuls in the reference so the 1e-4 comparison is meaningful
    # (the in-kernel dots are already pinned to HIGHEST precision).
    jax.config.update("jax_default_matmul_precision", "highest")

    D = 3          # matches module-level D in the PyTorch script
    h = 32         # hidden width

    key = jax.random.PRNGKey(0)
    kx, kp = jax.random.split(key)
    params = init_params(kp, D, h)

    # B=500 exercises pad + un-pad of a ragged batch; B=4096 exercises an
    # exact multi-step grid with larger lane tiles.
    for B in (500, 4096):
        x = jax.random.normal(jax.random.fold_in(kx, B), (B, D), jnp.float32)
        fwd = jax.jit(lambda xin: estimator_forward(xin, params))
        out = jax.block_until_ready(fwd(x))

        ref = _reference(x, params)
        assert out.shape == (B, D) and out.dtype == jnp.float32
        assert jnp.allclose(out, ref, atol=1e-4, rtol=1e-4), (
            f"mismatch at B={B}: max abs err {float(jnp.max(jnp.abs(out - ref)))}")

    print("KERNEL_OK")
</pallas_src>

<mosaic_0001>
module attributes {stable_mosaic.version = 11 : i64} {
  func.func @_mlp_t_kernel(%arg0: i32, %arg1: memref<3x256xf32, #tpu.memory_space<vmem>>, %arg2: memref<32x3xf32, #tpu.memory_space<vmem>>, %arg3: memref<32x1xf32, #tpu.memory_space<vmem>>, %arg4: memref<32x32xf32, #tpu.memory_space<vmem>>, %arg5: memref<32x1xf32, #tpu.memory_space<vmem>>, %arg6: memref<3x32xf32, #tpu.memory_space<vmem>>, %arg7: memref<3x1xf32, #tpu.memory_space<vmem>>, %arg8: memref<3x256xf32, #tpu.memory_space<vmem>>) attributes {dimension_semantics = [#tpu.dimension_semantics<parallel>], iteration_bounds = array<i64: 2>, scalar_prefetch = 0 : i64, scratch_operands = 0 : i64, tpu.core_type = #tpu.core_type<tc>, window_params = [{transform_indices = @transform_0, window_bounds = array<i64: 3, 256>}, {pipeline_mode = #tpu.pipeline_mode<synchronous>, transform_indices = @transform_1, window_bounds = array<i64: 32, 3>}, {pipeline_mode = #tpu.pipeline_mode<synchronous>, transform_indices = @transform_2, window_bounds = array<i64: 32, 1>}, {pipeline_mode = #tpu.pipeline_mode<synchronous>, transform_indices = @transform_3, window_bounds = array<i64: 32, 32>}, {pipeline_mode = #tpu.pipeline_mode<synchronous>, transform_indices = @transform_4, window_bounds = array<i64: 32, 1>}, {pipeline_mode = #tpu.pipeline_mode<synchronous>, transform_indices = @transform_5, window_bounds = array<i64: 3, 32>}, {pipeline_mode = #tpu.pipeline_mode<synchronous>, transform_indices = @transform_6, window_bounds = array<i64: 3, 1>}, {transform_indices = @transform_7, window_bounds = array<i64: 3, 256>}]} {
    %c0 = arith.constant 0 : index
    %c0_0 = arith.constant 0 : index
    %0 = vector.load %arg1[%c0, %c0_0] : memref<3x256xf32, #tpu.memory_space<vmem>>, vector<3x256xf32>
    %c0_1 = arith.constant 0 : index
    %c0_2 = arith.constant 0 : index
    %1 = vector.load %arg2[%c0_1, %c0_2] : memref<32x3xf32, #tpu.memory_space<vmem>>, vector<32x3xf32>
    %c0_3 = arith.constant 0 : index
    %c0_4 = arith.constant 0 : index
    %2 = vector.load %arg3[%c0_3, %c0_4] : memref<32x1xf32, #tpu.memory_space<vmem>>, vector<32x1xf32>
    %3 = vector.extract_strided_slice %1 {offsets = [0, 0], sizes = [32, 1], strides = [1, 1]} : vector<32x3xf32> to vector<32x1xf32>
    %4 = vector.extract_strided_slice %0 {offsets = [0, 0], sizes = [1, 256], strides = [1, 1]} : vector<3x256xf32> to vector<1x256xf32>
    %5 = vector.broadcast %3 : vector<32x1xf32> to vector<32x256xf32>
    %6 = vector.broadcast %4 : vector<1x256xf32> to vector<32x256xf32>
    %7 = arith.mulf %5, %6 : vector<32x256xf32>
    %8 = vector.broadcast %2 : vector<32x1xf32> to vector<32x256xf32>
    %9 = arith.addf %8, %7 : vector<32x256xf32>
    %10 = vector.extract_strided_slice %1 {offsets = [0, 1], sizes = [32, 1], strides = [1, 1]} : vector<32x3xf32> to vector<32x1xf32>
    %11 = vector.extract_strided_slice %0 {offsets = [1, 0], sizes = [1, 256], strides = [1, 1]} : vector<3x256xf32> to vector<1x256xf32>
    %12 = vector.broadcast %10 : vector<32x1xf32> to vector<32x256xf32>
    %13 = vector.broadcast %11 : vector<1x256xf32> to vector<32x256xf32>
    %14 = arith.mulf %12, %13 : vector<32x256xf32>
    %15 = arith.addf %9, %14 : vector<32x256xf32>
    %16 = vector.extract_strided_slice %1 {offsets = [0, 2], sizes = [32, 1], strides = [1, 1]} : vector<32x3xf32> to vector<32x1xf32>
    %17 = vector.extract_strided_slice %0 {offsets = [2, 0], sizes = [1, 256], strides = [1, 1]} : vector<3x256xf32> to vector<1x256xf32>
    %18 = vector.broadcast %16 : vector<32x1xf32> to vector<32x256xf32>
    %19 = vector.broadcast %17 : vector<1x256xf32> to vector<32x256xf32>
    %20 = arith.mulf %18, %19 : vector<32x256xf32>
    %21 = arith.addf %15, %20 : vector<32x256xf32>
    %cst = arith.constant 0.000000e+00 : f32
    %22 = vector.broadcast %cst : f32 to vector<32x256xf32>
    %23 = arith.maximumf %21, %22 : vector<32x256xf32>
    %c0_5 = arith.constant 0 : index
    %c0_6 = arith.constant 0 : index
    %24 = vector.load %arg4[%c0_5, %c0_6] : memref<32x32xf32, #tpu.memory_space<vmem>>, vector<32x32xf32>
    %cst_7 = arith.constant dense<0.000000e+00> : vector<32x256xf32>
    %25 = tpu.matmul %24, %23, %cst_7 {dimension_numbers = #tpu.dot_dimension_numbers<[1], [0], [0], [1], [0, 0, 1, 1], [], []>, precision = #tpu.contract_precision<fp32>} : vector<32x32xf32>, vector<32x256xf32>, vector<32x256xf32> -> vector<32x256xf32>
    %c0_8 = arith.constant 0 : index
    %c0_9 = arith.constant 0 : index
    %26 = vector.load %arg5[%c0_8, %c0_9] : memref<32x1xf32, #tpu.memory_space<vmem>>, vector<32x1xf32>
    %27 = vector.broadcast %26 : vector<32x1xf32> to vector<32x256xf32>
    %28 = arith.addf %25, %27 : vector<32x256xf32>
    %cst_10 = arith.constant 0.000000e+00 : f32
    %29 = vector.broadcast %cst_10 : f32 to vector<32x256xf32>
    %30 = arith.maximumf %28, %29 : vector<32x256xf32>
    %c0_11 = arith.constant 0 : index
    %c0_12 = arith.constant 0 : index
    %31 = vector.load %arg6[%c0_11, %c0_12] : memref<3x32xf32, #tpu.memory_space<vmem>>, vector<3x32xf32>
    %cst_13 = arith.constant dense<0.000000e+00> : vector<3x256xf32>
    %32 = tpu.matmul %31, %30, %cst_13 {dimension_numbers = #tpu.dot_dimension_numbers<[1], [0], [0], [1], [0, 0, 1, 1], [], []>, precision = #tpu.contract_precision<fp32>} : vector<3x32xf32>, vector<32x256xf32>, vector<3x256xf32> -> vector<3x256xf32>
    %c0_14 = arith.constant 0 : index
    %c0_15 = arith.constant 0 : index
    %33 = vector.load %arg7[%c0_14, %c0_15] : memref<3x1xf32, #tpu.memory_space<vmem>>, vector<3x1xf32>
    %34 = vector.broadcast %33 : vector<3x1xf32> to vector<3x256xf32>
    %35 = arith.addf %32, %34 : vector<3x256xf32>
    %c0_16 = arith.constant 0 : index
    %c0_17 = arith.constant 0 : index
    %36 = vector.load %arg8[%c0_16, %c0_17] : memref<3x256xf32, #tpu.memory_space<vmem>>, vector<3x256xf32>
    tpu.vector_store %arg8[%c0_16, %c0_17], %35 {strides = array<i32>} : memref<3x256xf32, #tpu.memory_space<vmem>>, vector<3x256xf32>,
    return
  }
  func.func @transform_0(%arg0: i32) -> (i32, i32) {
    %c0_i32 = arith.constant 0 : i32
    %c0_i32_0 = arith.constant 0 : i32
    return %c0_i32, %arg0 : i32, i32
  }
  func.func @transform_1(%arg0: i32) -> (i32, i32) {
    %c0_i32 = arith.constant 0 : i32
    %c0_i32_0 = arith.constant 0 : i32
    %c0_i32_1 = arith.constant 0 : i32
    return %c0_i32, %c0_i32_0 : i32, i32
  }
  func.func @transform_2(%arg0: i32) -> (i32, i32) {
    %c0_i32 = arith.constant 0 : i32
    %c0_i32_0 = arith.constant 0 : i32
    %c0_i32_1 = arith.constant 0 : i32
    return %c0_i32, %c0_i32_0 : i32, i32
  }
  func.func @transform_3(%arg0: i32) -> (i32, i32) {
    %c0_i32 = arith.constant 0 : i32
    %c0_i32_0 = arith.constant 0 : i32
    %c0_i32_1 = arith.constant 0 : i32
    return %c0_i32, %c0_i32_0 : i32, i32
  }
  func.func @transform_4(%arg0: i32) -> (i32, i32) {
    %c0_i32 = arith.constant 0 : i32
    %c0_i32_0 = arith.constant 0 : i32
    %c0_i32_1 = arith.constant 0 : i32
    return %c0_i32, %c0_i32_0 : i32, i32
  }
  func.func @transform_5(%arg0: i32) -> (i32, i32) {
    %c0_i32 = arith.constant 0 : i32
    %c0_i32_0 = arith.constant 0 : i32
    %c0_i32_1 = arith.constant 0 : i32
    return %c0_i32, %c0_i32_0 : i32, i32
  }
  func.func @transform_6(%arg0: i32) -> (i32, i32) {
    %c0_i32 = arith.constant 0 : i32
    %c0_i32_0 = arith.constant 0 : i32
    %c0_i32_1 = arith.constant 0 : i32
    return %c0_i32, %c0_i32_0 : i32, i32
  }
  func.func @transform_7(%arg0: i32) -> (i32, i32) {
    %c0_i32 = arith.constant 0 : i32
    %c0_i32_0 = arith.constant 0 : i32
    return %c0_i32, %arg0 : i32, i32
  }
}

</mosaic_0001>

<llo_original>
// kernel: _lambda_.2
$region0: #{_lambda_.2}
  #allocation0 [shape = 'u32[]', space=smem, size = 0x4, offset = 0x4, fixed_abs, tag = 'smem constant byte address 0x4 - core index']
  #allocation1 [shape = 'u32[72,128]{1,0:T(1,128)}', space=vmem, size = 0x9000, scoped, tag = 'internal scratch']
  #allocation2 [shape = 'u32[2048]{0}', space=vmem, size = 0x2000, scoped, tag = 'scoped memory for _lambda_.2']
  #allocation3 [shape = 'u32[2048]{0}', space=vmem, size = 0x2000, scoped, tag = 'scoped memory for _lambda_.2']
  #allocation4 [shape = 'u32[2048]{0}', space=vmem, size = 0x2000, scoped, tag = 'scoped memory for _lambda_.2']
  #allocation5 [shape = 'u32[2048]{0}', space=vmem, size = 0x2000, scoped, tag = 'scoped memory for _lambda_.2']
  #allocation6 [shape = 'u32[2048]{0}', space=vmem, size = 0x2000, scoped, tag = 'scoped memory for _lambda_.2']
  %s0 = inlined_call_operand.hbm [shape: f32[32,3], index: 0, kind: input, shape index: {}]
  %s1 = inlined_call_operand.hbm [shape: f32[32,1], index: 1, kind: input, shape index: {}]
  %s2 = inlined_call_operand.hbm [shape: f32[32,32], index: 2, kind: input, shape index: {}]
  %s3 = inlined_call_operand.hbm [shape: f32[32,1], index: 3, kind: input, shape index: {}]
  %s4 = inlined_call_operand.hbm [shape: f32[3,32], index: 4, kind: input, shape index: {}]
  %s5 = inlined_call_operand.hbm [shape: f32[3,1], index: 5, kind: input, shape index: {}]
  %s6 = inlined_call_operand.hbm [shape: f32[500,3], index: 6, kind: input, shape index: {}]
  %s7 = inlined_call_operand.<no memory space> [shape: f32[], index: 7, kind: input, shape index: {}]
  %s8 = inlined_call_operand.hbm [shape: f32[3,512], index: 8, kind: output, shape index: {}]
  %s9 = sld [smem:[#allocation0]]
  $region89: #{_lambda_.2} parent=0
    _
  %s11 = ssub.s32 1, %s9
  %s12 = scalar_select 0, %s11, %s9
  %v13 = vstv %s7
  $region1: #{_lambda_.2} parent=0
    #allocation7 [shape = 'u8[8192]{0}', space=vmem, size = 0x2000, scoped, tag = 'operand span for operand 6']
    #allocation8 [shape = 's32[2]{0}', space=sflag, size = 0x8, scoped, tag = 'scoped memory for _lambda_.2']
    #allocation9 [shape = 's32[2]{0}', space=sflag, size = 0x8, scoped, tag = 'scoped memory for _lambda_.2']
    #allocation10 [shape = 'u8[16384]{0}', space=vmem, size = 0x4000, scoped, tag = 'input window, operand 1, single buffered']
    #allocation11 [shape = 's32[1]{0}', space=sflag, size = 0x4, scoped, tag = 'scoped memory for _lambda_.2']
    #allocation12 [shape = 'u8[16384]{0}', space=vmem, size = 0x4000, scoped, tag = 'input window, operand 2, single buffered']
    #allocation13 [shape = 'u8[16384]{0}', space=vmem, size = 0x4000, scoped, tag = 'input window, operand 3, single buffered']
    #allocation14 [shape = 's32[1]{0}', space=sflag, size = 0x4, scoped, tag = 'scoped memory for _lambda_.2']
    #allocation15 [shape = 'u8[16384]{0}', space=vmem, size = 0x4000, scoped, tag = 'input window, operand 4, single buffered']
    #allocation16 [shape = 'u8[2048]{0}', space=vmem, size = 0x800, scoped, tag = 'input window, operand 5, single buffered']
    #allocation17 [shape = 's32[1]{0}', space=sflag, size = 0x4, scoped, tag = 'scoped memory for _lambda_.2']
    #allocation18 [shape = 'u8[2048]{0}', space=vmem, size = 0x800, scoped, tag = 'input window, operand 6, single buffered']
    #allocation19 [shape = 'u8[8192]{0}', space=vmem, size = 0x2000, scoped, tag = 'output window, operand 0']
    %14 = vsyncpa [#allocation8], 0
    %s15 = scalar_lea.sflag [#allocation8], 1
    %16 = vsyncpa %s15, 0
    %17 = vsyncpa [#allocation11], 0
    %18 = vsyncpa [#allocation14], 0
    %19 = vsyncpa [#allocation17], 0
    %20 = vsyncpa [#allocation9], 0
    %s21 = scalar_lea.sflag [#allocation9], 1
    %22 = vsyncpa %s21, 0
    loop: start=0, step=1, limit=4
    $region2: #{_lambda_.2} parent=1 // loop_pre_header
      _
    $region3: #{_lambda_.2} parent=1 // loop_header
      %s24 = sphi 0, %s28
      %p25 = scmp.ge.s32.totalorder %s24, 4
      %s34 = sphi 0, %s36
      %s37 = sphi 0, %s34
      %s38 = sphi 0, %s37
      %s54 = sphi 0, %s38
      %s58 = sphi 0, %s58
      %s60 = sphi 0, %s58
      %s61 = sphi 0, %s60
      %s75 = sphi 0, %s61
      %s79 = sphi 0, %s79
      %s81 = sphi 0, %s79
      %s82 = sphi 0, %s81
      %s96 = sphi 0, %s82
      %s100 = sphi 0, %s100
      %s102 = sphi 0, %s100
      %s103 = sphi 0, %s102
      %s117 = sphi 0, %s103
      %s121 = sphi 0, %s121
      %s123 = sphi 0, %s121
      %s124 = sphi 0, %s123
      %s138 = sphi 0, %s124
      %s142 = sphi 0, %s142
      %s144 = sphi 0, %s142
      %s145 = sphi 0, %s144
      %s159 = sphi 0, %s145
      %s163 = sphi 0, %s163
      %s165 = sphi 0, %s163
      %s166 = sphi 0, %s165
      %s180 = sphi 0, %s166
      %s186 = sphi 0, %s188
      %s189 = sphi 0, %s186
      %s190 = sphi 0, %s189
      %s206 = sphi 0, %s190
    $region4: #{_lambda_.2} parent=1 // loop_header_branch
      %27 = sbr.rel (%p25) target = $region8
    $region5: #{_lambda_.2} parent=1 // loop_body
      %s29 = ssub.s32 %s24, 1
      %s30 = ssub.s32 %s24, 2
      %s31 = sadd.s32 %s24, 1
      %s32 = ssub.s32 %s24, %s31
      %p33 = scmp.eq.s32.totalorder %s32, 0
      %s35 = sadd.s32 %s34, 1
      %s36 = scalar_select %p33, %s34, %s35
      %p39 = pneg %p33
      %p40 = scmp.eq.s32.totalorder %s24, 1
      %p41 = por %p39, %p40
      %p42 = scmp.ne.s32.totalorder %s34, %s37
      %p43 = scmp.eq.s32.totalorder %s24, 0
      %p44 = por %p42, %p43
      %p45 = scmp.ne.s32.totalorder %s34, %s37
      %p46 = scmp.eq.s32.totalorder %s29, 1
      %p47 = por %p45, %p46
      %p48 = scmp.ne.s32.totalorder %s37, %s38
      %p49 = scmp.eq.s32.totalorder %s29, 0
      %p50 = por %p48, %p49
      %p51 = scmp.ne.s32.totalorder %s37, %s38
      %p52 = scmp.eq.s32.totalorder %s30, 1
      %p53 = por %p51, %p52
      %p55 = scmp.ne.s32.totalorder %s38, %s54
      %p56 = scmp.eq.s32.totalorder %s30, 0
      %p57 = por %p55, %p56
      %s59 = sadd.s32 %s58, 1
      %p62 = scmp.eq.s32.totalorder %s24, 1
      %p63 = scmp.ne.s32.totalorder %s58, %s60
      %p64 = scmp.eq.s32.totalorder %s24, 0
      %p65 = por %p63, %p64
      %p66 = scmp.ne.s32.totalorder %s58, %s60
      %p67 = scmp.eq.s32.totalorder %s29, 1
      %p68 = por %p66, %p67
      %p69 = scmp.ne.s32.totalorder %s60, %s61
      %p70 = scmp.eq.s32.totalorder %s29, 0
      %p71 = por %p69, %p70
      %p72 = scmp.ne.s32.totalorder %s60, %s61
      %p73 = scmp.eq.s32.totalorder %s30, 1
      %p74 = por %p72, %p73
      %p76 = scmp.ne.s32.totalorder %s61, %s75
      %p77 = scmp.eq.s32.totalorder %s30, 0
      %p78 = por %p76, %p77
      %s80 = sadd.s32 %s79, 1
      %p83 = scmp.eq.s32.totalorder %s24, 1
      %p84 = scmp.ne.s32.totalorder %s79, %s81
      %p85 = scmp.eq.s32.totalorder %s24, 0
      %p86 = por %p84, %p85
      %p87 = scmp.ne.s32.totalorder %s79, %s81
      %p88 = scmp.eq.s32.totalorder %s29, 1
      %p89 = por %p87, %p88
      %p90 = scmp.ne.s32.totalorder %s81, %s82
      %p91 = scmp.eq.s32.totalorder %s29, 0
      %p92 = por %p90, %p91
      %p93 = scmp.ne.s32.totalorder %s81, %s82
      %p94 = scmp.eq.s32.totalorder %s30, 1
      %p95 = por %p93, %p94
      %p97 = scmp.ne.s32.totalorder %s82, %s96
      %p98 = scmp.eq.s32.totalorder %s30, 0
      %p99 = por %p97, %p98
      %s101 = sadd.s32 %s100, 1
      %p104 = scmp.eq.s32.totalorder %s24, 1
      %p105 = scmp.ne.s32.totalorder %s100, %s102
      %p106 = scmp.eq.s32.totalorder %s24, 0
      %p107 = por %p105, %p106
      %p108 = scmp.ne.s32.totalorder %s100, %s102
      %p109 = scmp.eq.s32.totalorder %s29, 1
      %p110 = por %p108, %p109
      %p111 = scmp.ne.s32.totalorder %s102, %s103
      %p112 = scmp.eq.s32.totalorder %s29, 0
      %p113 = por %p111, %p112
      %p114 = scmp.ne.s32.totalorder %s102, %s103
      %p115 = scmp.eq.s32.totalorder %s30, 1
      %p116 = por %p114, %p115
      %p118 = scmp.ne.s32.totalorder %s103, %s117
      %p119 = scmp.eq.s32.totalorder %s30, 0
      %p120 = por %p118, %p119
      %s122 = sadd.s32 %s121, 1
      %p125 = scmp.eq.s32.totalorder %s24, 1
      %p126 = scmp.ne.s32.totalorder %s121, %s123
      %p127 = scmp.eq.s32.totalorder %s24, 0
      %p128 = por %p126, %p127
      %p129 = scmp.ne.s32.totalorder %s121, %s123
      %p130 = scmp.eq.s32.totalorder %s29, 1
      %p131 = por %p129, %p130
      %p132 = scmp.ne.s32.totalorder %s123, %s124
      %p133 = scmp.eq.s32.totalorder %s29, 0
      %p134 = por %p132, %p133
      %p135 = scmp.ne.s32.totalorder %s123, %s124
      %p136 = scmp.eq.s32.totalorder %s30, 1
      %p137 = por %p135, %p136
      %p139 = scmp.ne.s32.totalorder %s124, %s138
      %p140 = scmp.eq.s32.totalorder %s30, 0
      %p141 = por %p139, %p140
      %s143 = sadd.s32 %s142, 1
      %p146 = scmp.eq.s32.totalorder %s24, 1
      %p147 = scmp.ne.s32.totalorder %s142, %s144
      %p148 = scmp.eq.s32.totalorder %s24, 0
      %p149 = por %p147, %p148
      %p150 = scmp.ne.s32.totalorder %s142, %s144
      %p151 = scmp.eq.s32.totalorder %s29, 1
      %p152 = por %p150, %p151
      %p153 = scmp.ne.s32.totalorder %s144, %s145
      %p154 = scmp.eq.s32.totalorder %s29, 0
      %p155 = por %p153, %p154
      %p156 = scmp.ne.s32.totalorder %s144, %s145
      %p157 = scmp.eq.s32.totalorder %s30, 1
      %p158 = por %p156, %p157
      %p160 = scmp.ne.s32.totalorder %s145, %s159
      %p161 = scmp.eq.s32.totalorder %s30, 0
      %p162 = por %p160, %p161
      %s164 = sadd.s32 %s163, 1
      %p167 = scmp.eq.s32.totalorder %s24, 1
      %p168 = scmp.ne.s32.totalorder %s163, %s165
      %p169 = scmp.eq.s32.totalorder %s24, 0
      %p170 = por %p168, %p169
      %p171 = scmp.ne.s32.totalorder %s163, %s165
      %p172 = scmp.eq.s32.totalorder %s29, 1
      %p173 = por %p171, %p172
      %p174 = scmp.ne.s32.totalorder %s165, %s166
      %p175 = scmp.eq.s32.totalorder %s29, 0
      %p176 = por %p174, %p175
      %p177 = scmp.ne.s32.totalorder %s165, %s166
      %p178 = scmp.eq.s32.totalorder %s30, 1
      %p179 = por %p177, %p178
      %p181 = scmp.ne.s32.totalorder %s166, %s180
      %p182 = scmp.eq.s32.totalorder %s30, 0
      %p183 = por %p181, %p182
      %s184 = ssub.s32 %s24, %s31
      %p185 = scmp.eq.s32.totalorder %s184, 0
      %s187 = sadd.s32 %s186, 1
      %s188 = scalar_select %p185, %s186, %s187
      %p191 = pneg %p185
      %p192 = scmp.eq.s32.totalorder %s24, 1
      %p193 = por %p191, %p192
      %p194 = scmp.ne.s32.totalorder %s186, %s189
      %p195 = scmp.eq.s32.totalorder %s24, 0
      %p196 = por %p194, %p195
      %p197 = scmp.ne.s32.totalorder %s186, %s189
      %p198 = scmp.eq.s32.totalorder %s29, 1
      %p199 = por %p197, %p198
      %p200 = scmp.ne.s32.totalorder %s189, %s190
      %p201 = scmp.eq.s32.totalorder %s29, 0
      %p202 = por %p200, %p201
      %p203 = scmp.ne.s32.totalorder %s189, %s190
      %p204 = scmp.eq.s32.totalorder %s30, 1
      %p205 = por %p203, %p204
      %p207 = scmp.ne.s32.totalorder %s190, %s206
      %p208 = scmp.eq.s32.totalorder %s30, 0
      %p209 = por %p207, %p208
      %p210 = scmp.le.s32.totalorder 1, %s24
      %p211 = scmp.lt.s32.totalorder %s24, 3
      %p212 = pnand %p210, %p211
      %p213 = pneg %p212
      // Predicated region
      $region9: #{_lambda_.2} parent=5 // pred_check
        _
      $region10: #{_lambda_.2} parent=5 // pred_check_branch
        %215 = sbr.rel (%p212) target = $region12
      $region11: #{_lambda_.2} parent=5 // pred_region
        %s216 = ssub.s32 %s24, 1
        // Predicated region
        $region13: #{_lambda_.2} parent=11 // pred_check
          %p217 = pneg %p71
        $region14: #{_lambda_.2} parent=11 // pred_check_branch
          %219 = sbr.rel (%p217) target = $region16
        $region15: #{_lambda_.2} parent=11 // pred_region
          %221 = vsyncadd [#allocation11], 0
          %s222 = sshll.u32 %s0, 4
          %s223 = int_to_ptr.hbm [resolvable:$true] %s222
          %s224 = sshll.u32 [#allocation10], 4
          %s225 = int_to_ptr.vmem [resolvable:$true] %s224
          %230 = dma.hbm_to_vmem [thread:$0]  %s223, 512, %s225, [#allocation11], 128, 128, 8
        $region16: #{_lambda_.2} parent=11 // pred_fallthru
          _
        // Predicated region
        $region17: #{_lambda_.2} parent=11 // pred_check
          %p231 = pneg %p92
        $region18: #{_lambda_.2} parent=11 // pred_check_branch
          %233 = sbr.rel (%p231) target = $region20
        $region19: #{_lambda_.2} parent=11 // pred_region
          %235 = vsyncadd [#allocation11], 0
          %s236 = sshll.u32 %s1, 4
          %s237 = int_to_ptr.hbm [resolvable:$true] %s236
          %s238 = sshll.u32 [#allocation12], 4
          %s239 = int_to_ptr.vmem [resolvable:$true] %s238
          %244 = dma.hbm_to_vmem [thread:$0]  %s237, 512, %s239, [#allocation11], 128, 128, 8
        $region20: #{_lambda_.2} parent=11 // pred_fallthru
          _
        // Predicated region
        $region21: #{_lambda_.2} parent=11 // pred_check
          %p245 = pneg %p113
        $region22: #{_lambda_.2} parent=11 // pred_check_branch
          %247 = sbr.rel (%p245) target = $region24
        $region23: #{_lambda_.2} parent=11 // pred_region
          %249 = vsyncadd [#allocation14], 0
          %s250 = sshll.u32 %s2, 4
          %s251 = int_to_ptr.hbm [resolvable:$true] %s250
          %s252 = sshll.u32 [#allocation13], 4
          %s253 = int_to_ptr.vmem [resolvable:$true] %s252
          %258 = dma.hbm_to_vmem [thread:$0]  %s251, 512, %s253, [#allocation14], 128, 128, 8
        $region24: #{_lambda_.2} parent=11 // pred_fallthru
          _
        // Predicated region
        $region25: #{_lambda_.2} parent=11 // pred_check
          %p259 = pneg %p134
        $region26: #{_lambda_.2} parent=11 // pred_check_branch
          %261 = sbr.rel (%p259) target = $region28
        $region27: #{_lambda_.2} parent=11 // pred_region
          %263 = vsyncadd [#allocation14], 0
          %s264 = sshll.u32 %s3, 4
          %s265 = int_to_ptr.hbm [resolvable:$true] %s264
          %s266 = sshll.u32 [#allocation15], 4
          %s267 = int_to_ptr.vmem [resolvable:$true] %s266
          %272 = dma.hbm_to_vmem [thread:$0]  %s265, 512, %s267, [#allocation14], 128, 128, 8
        $region28: #{_lambda_.2} parent=11 // pred_fallthru
          _
        // Predicated region
        $region29: #{_lambda_.2} parent=11 // pred_check
          %p273 = pneg %p155
        $region30: #{_lambda_.2} parent=11 // pred_check_branch
          %275 = sbr.rel (%p273) target = $region32
        $region31: #{_lambda_.2} parent=11 // pred_region
          %277 = vsyncadd [#allocation17], 0
          %s279 = sshll.u32 %s4, 4
          %s280 = int_to_ptr.hbm [resolvable:$true] %s279
          %s281 = sshll.u32 [#allocation16], 4
          %s282 = int_to_ptr.vmem [resolvable:$true] %s281
          %284 = dma.hbm_to_vmem [thread:$0]  %s280, 64, %s282, [#allocation17]
        $region32: #{_lambda_.2} parent=11 // pred_fallthru
          _
        // Predicated region
        $region33: #{_lambda_.2} parent=11 // pred_check
          %p285 = pneg %p176
        $region34: #{_lambda_.2} parent=11 // pred_check_branch
          %287 = sbr.rel (%p285) target = $region36
        $region35: #{_lambda_.2} parent=11 // pred_region
          %289 = vsyncadd [#allocation17], 0
          %s291 = sshll.u32 %s5, 4
          %s292 = int_to_ptr.hbm [resolvable:$true] %s291
          %s293 = sshll.u32 [#allocation18], 4
          %s294 = int_to_ptr.vmem [resolvable:$true] %s293
          %296 = dma.hbm_to_vmem [thread:$0]  %s292, 64, %s294, [#allocation17]
        $region36: #{_lambda_.2} parent=11 // pred_fallthru
          _
      $region12: #{_lambda_.2} parent=5 // pred_fallthru
        _
      %p297 = scmp.lt.s32.totalorder %s24, 2
      // Predicated region
      $region37: #{_lambda_.2} parent=5 // pred_check
        %p298 = pneg %p297
      $region38: #{_lambda_.2} parent=5 // pred_check_branch
        %300 = sbr.rel (%p298) target = $region40
      $region39: #{_lambda_.2} parent=5 // pred_region
        // Predicated region
        $region41: #{_lambda_.2} parent=39 // pred_check
          %p301 = pneg %p44
        $region42: #{_lambda_.2} parent=39 // pred_check_branch
          %303 = sbr.rel (%p301) target = $region44
        $region43: #{_lambda_.2} parent=39 // pred_region
          %s304 = sand.u32 %s34, 1
          %s305 = scalar_lea.sflag [#allocation8], %s304
          %s306 = sand.u32 %s34, 1
          %s307 = smul.addr %s306, 8
          %s308 = scalar_lea.vmem [#allocation7], %s307
          %s309 = smul.u32 2, %s24
          %s310 = ssub.s32 4, %s309
          %p311 = scmp.lt.s32.totalorder %s310, 2
          %s312 = scalar_select %p311, %s310, 2
          %s313 = smul.u32 4, %s312
          %s314 = ssub.s32 8, %s313
          %s315 = sshll.u32 %s314, 4
          %316 = vsyncadd %s305, %s315
          %p317 = scmp.ne.s32.totalorder 0, %s313
          %s318 = smul.addr %s309, 4
          %s319 = scalar_lea.hbm %s6, %s318
          %s320 = smul.u32 %s312, 4
          %s321 = sshll.u32 %s320, 4
          %s322 = sshll.u32 %s319, 4
          %s323 = int_to_ptr.hbm [resolvable:$true] %s322
          %s324 = sshll.u32 %s308, 4
          %s325 = int_to_ptr.vmem [resolvable:$true] %s324
          %327 = dma.hbm_to_vmem [thread:$0]  (%p317), %s323, %s321, %s325, %s305
        $region44: #{_lambda_.2} parent=39 // pred_fallthru
          _
      $region40: #{_lambda_.2} parent=5 // pred_fallthru
        _
      %p328 = scmp.le.s32.totalorder 1, %s24
      %p329 = scmp.lt.s32.totalorder %s24, 3
      %p330 = pnand %p328, %p329
      %p331 = pneg %p330
      // Predicated region
      $region45: #{_lambda_.2} parent=5 // pred_check
        _
      $region46: #{_lambda_.2} parent=5 // pred_check_branch
        %333 = sbr.rel (%p330) target = $region48
      $region47: #{_lambda_.2} parent=5 // pred_region
        #allocation20 [shape = 'u8[4096]{0}', space=vmem, size = 0x1000, dematerialized = true, scoped, tag = 'FusionAdapter Buffer %fusion.1 = f32[3,512]{1,0:T(4,128)} fusion(%param_6.2, %param_7), kind=kLoop, calls=%fused_computation.1.clone, metadata={op_name="jit(<lambda>)/transpose" stack_frame_id=10}']
        %s334 = ssub.s32 %s24, 1
        %s335 = sand.u32 %s37, 1
        %s336 = scalar_lea.sflag [#allocation8], %s335
        %s337 = sand.u32 %s37, 1
        %s338 = smul.addr %s337, 8
        %s339 = scalar_lea.vmem [#allocation7], %s338
        // Predicated region
        $region49: #{_lambda_.2} parent=47 // pred_check
          %p340 = pneg %p50
        $region50: #{_lambda_.2} parent=47 // pred_check_branch
          %342 = sbr.rel (%p340) target = $region52
        $region51: #{_lambda_.2} parent=47 // pred_region
          %344 = dma.done %s336, 128
        $region52: #{_lambda_.2} parent=47 // pred_fallthru
          _
        // Predicated region
        $region53: #{_lambda_.2} parent=47 // pred_check
          %p345 = pneg %p71
        $region54: #{_lambda_.2} parent=47 // pred_check_branch
          %347 = sbr.rel (%p345) target = $region56
        $region55: #{_lambda_.2} parent=47 // pred_region
          %349 = dma.done [#allocation11], 512
        $region56: #{_lambda_.2} parent=47 // pred_fallthru
          _
        // Predicated region
        $region57: #{_lambda_.2} parent=47 // pred_check
          %p350 = pneg %p92
        $region58: #{_lambda_.2} parent=47 // pred_check_branch
          %352 = sbr.rel (%p350) target = $region60
        $region59: #{_lambda_.2} parent=47 // pred_region
          %354 = dma.done [#allocation11], 512
        $region60: #{_lambda_.2} parent=47 // pred_fallthru
          _
        // Predicated region
        $region61: #{_lambda_.2} parent=47 // pred_check
          %p355 = pneg %p113
        $region62: #{_lambda_.2} parent=47 // pred_check_branch
          %357 = sbr.rel (%p355) target = $region64
        $region63: #{_lambda_.2} parent=47 // pred_region
          %359 = dma.done [#allocation14], 512
        $region64: #{_lambda_.2} parent=47 // pred_fallthru
          _
        // Predicated region
        $region65: #{_lambda_.2} parent=47 // pred_check
          %p360 = pneg %p134
        $region66: #{_lambda_.2} parent=47 // pred_check_branch
          %362 = sbr.rel (%p360) target = $region68
        $region67: #{_lambda_.2} parent=47 // pred_region
          %364 = dma.done [#allocation14], 512
        $region68: #{_lambda_.2} parent=47 // pred_fallthru
          _
        // Predicated region
        $region69: #{_lambda_.2} parent=47 // pred_check
          %p365 = pneg %p155
        $region70: #{_lambda_.2} parent=47 // pred_check_branch
          %367 = sbr.rel (%p365) target = $region72
        $region71: #{_lambda_.2} parent=47 // pred_region
          %369 = dma.done [#allocation17], 64
        $region72: #{_lambda_.2} parent=47 // pred_fallthru
          _
        // Predicated region
        $region73: #{_lambda_.2} parent=47 // pred_check
          %p370 = pneg %p176
        $region74: #{_lambda_.2} parent=47 // pred_check_branch
          %372 = sbr.rel (%p370) target = $region76
        $region75: #{_lambda_.2} parent=47 // pred_region
          %374 = dma.done [#allocation17], 64
        $region76: #{_lambda_.2} parent=47 // pred_fallthru
          _
        %s375 = sand.u32 %s37, 1
        %s376 = scalar_lea.sflag [#allocation8], %s375
        %s377 = sand.u32 %s37, 1
        %s378 = smul.addr %s377, 8
        %s379 = scalar_lea.vmem [#allocation7], %s378
        %p380 = pneg %p50
        %p381 = pneg %p47
        %p382 = pneg %p71
        %p383 = pneg %p68
        %p384 = pneg %p92
        %p385 = pneg %p89
        %p386 = pneg %p113
        %p387 = pneg %p110
        %p388 = pneg %p134
        %p389 = pneg %p131
        %p390 = pneg %p155
        %p391 = pneg %p152
        %p392 = pneg %p176
        %p393 = pneg %p173
        %p394 = pneg %p202
        %p395 = pneg %p199
        %s396 = sand.u32 %s189, 1
        %s397 = scalar_lea.sflag [#allocation9], %s396
        %s398 = sand.u32 %s189, 1
        %s399 = smul.addr %s398, 8
        %s400 = scalar_lea.vmem [#allocation19], %s399
        %s401 = smul.u32 2, %s29
        %s402 = ssub.s32 4, %s401
        %p403 = scmp.lt.s32.totalorder %s402, 2
        %s404 = scalar_select %p403, %s402, 2
        %s405 = smul.u32 4, %s404
        %s406 = smul.u32 2, %s29
        %v407 = vld [vmem:[%s339] sm:$0x7]
        %v408 = vlaneseq
        %v409 = vshrl.u32 %v408, 7
        %vm411 = vcmp.lt.s32.totalorder %v409, 3
        %v412 = vsel %vm411, %v407, %v13
        %s413 = smul.addr %s401, 128
        %v414 = vlaneseq
        %v415 = vand.u32 %v414, 127
        %v416 = vstv %s413
        %v417 = vadd.s32 %v415, %v416
        %vm418 = vcmp.lt.s32.totalorder %v417, 500
        %v419 = vsel %vm418, %v412, %v13
        %s421 = ssub.s32 16, 1
        %422 = vst [vmem:[#allocation20] sm:%s421] %v419
        %s423 = scalar_lea.vmem %s339, 4 [#allocation7]
        %v424 = vld [vmem:[%s423] sm:$0x7]
        %s425 = sadd.s32 %s401, 1
        %s426 = ssub.s32 3, %s425
        %v427 = vstv %s426
        %vm428 = vcmp.lt.s32.totalorder %v427, 0
        %v429 = vsel %vm428, %v13, %v424
        %v430 = vlaneseq
        %v431 = vshrl.u32 %v430, 7
        %vm433 = vcmp.lt.s32.totalorder %v431, 3
        %v434 = vsel %vm433, %v429, %v13
        %s435 = sadd.s32 %s401, 1
        %s436 = smul.addr %s435, 128
        %v437 = vlaneseq
        %v438 = vand.u32 %v437, 127
        %v439 = vstv %s436
        %v440 = vadd.s32 %v438, %v439
        %vm441 = vcmp.lt.s32.totalorder %v440, 500
        %v442 = vsel %vm441, %v434, %v13
        %s443 = scalar_lea.vmem [#allocation20], 4
        %s445 = ssub.s32 16, 1
        %446 = vst [vmem:[%s443] sm:%s445] %v442
        %v447 = vld [vmem:[#allocation20] sm:$0x77]
        %v448 = vld [vmem:[#allocation10] sm:$0xff]
        %v449 = vld [vmem:[#allocation10 + $0x8] sm:$0xff]
        %v450 = vld [vmem:[#allocation10 + $0x10] sm:$0xff]
        %v451 = vld [vmem:[#allocation10 + $0x18] sm:$0xff]
        %v452 = vld [vmem:[#allocation12] sm:$0xff]
        %v453 = vld [vmem:[#allocation12 + $0x8] sm:$0xff]
        %v454 = vld [vmem:[#allocation12 + $0x10] sm:$0xff]
        %v455 = vld [vmem:[#allocation12 + $0x18] sm:$0xff]
        %457 = vset.pattern.permute.xlu0 0
        %458 = vperm.xlu0 %457, %v448
        %v459 = vpop.permute.xlu0 %458
        %462 = vset.pattern.permute.xlu0 0
        %463 = vperm.xlu0 %462, %v449
        %v464 = vpop.permute.xlu0 %463
        %467 = vset.pattern.permute.xlu0 0
        %468 = vperm.xlu0 %467, %v450
        %v469 = vpop.permute.xlu0 %468
        %472 = vset.pattern.permute.xlu0 0
        %473 = vperm.xlu0 %472, %v451
        %v474 = vpop.permute.xlu0 %473
        %v477 = vperm.slane %v447, 0
        %v478 = vperm.slane %v447, 4
        %v481 = vperm.slane %v477, 0
        %v482 = vperm.slane %v478, 0
        %v483 = vmul.f32 %v459, %v481
        %v484 = vmul.f32 %v459, %v482
        %v485 = vmul.f32 %v464, %v481
        %v486 = vmul.f32 %v464, %v482
        %v487 = vmul.f32 %v469, %v481
        %v488 = vmul.f32 %v469, %v482
        %v489 = vmul.f32 %v474, %v481
        %v490 = vmul.f32 %v474, %v482
        %492 = vset.pattern.permute.xlu0 0
        %493 = vperm.xlu0 %492, %v452
        %v494 = vpop.permute.xlu0 %493
        %497 = vset.pattern.permute.xlu0 0
        %498 = vperm.xlu0 %497, %v453
        %v499 = vpop.permute.xlu0 %498
        %502 = vset.pattern.permute.xlu0 0
        %503 = vperm.xlu0 %502, %v454
        %v504 = vpop.permute.xlu0 %503
        %507 = vset.pattern.permute.xlu0 0
        %508 = vperm.xlu0 %507, %v455
        %v509 = vpop.permute.xlu0 %508
        %v511 = vadd.f32 %v494, %v483
        %v512 = vadd.f32 %v494, %v484
        %v513 = vadd.f32 %v499, %v485
        %v514 = vadd.f32 %v499, %v486
        %v515 = vadd.f32 %v504, %v487
        %v516 = vadd.f32 %v504, %v488
        %v517 = vadd.f32 %v509, %v489
        %v518 = vadd.f32 %v509, %v490
        %519 = vset.pattern.permute.xlu0 1
        %520 = vperm.xlu0 %519, %v448
        %v521 = vpop.permute.xlu0 %520
        %523 = vset.pattern.permute.xlu0 1
        %524 = vperm.xlu0 %523, %v449
        %v525 = vpop.permute.xlu0 %524
        %527 = vset.pattern.permute.xlu0 1
        %528 = vperm.xlu0 %527, %v450
        %v529 = vpop.permute.xlu0 %528
        %531 = vset.pattern.permute.xlu0 1
        %532 = vperm.xlu0 %531, %v451
        %v533 = vpop.permute.xlu0 %532
        %v535 = vperm.slane %v447, 1
        %v536 = vperm.slane %v447, 5
        %v539 = vperm.slane %v535, 1
        %v540 = vperm.slane %v536, 1
        %v541 = vmul.f32 %v521, %v539
        %v542 = vmul.f32 %v521, %v540
        %v543 = vmul.f32 %v525, %v539
        %v544 = vmul.f32 %v525, %v540
        %v545 = vmul.f32 %v529, %v539
        %v546 = vmul.f32 %v529, %v540
        %v547 = vmul.f32 %v533, %v539
        %v548 = vmul.f32 %v533, %v540
        %v549 = vadd.f32 %v511, %v541
        %v550 = vadd.f32 %v512, %v542
        %v551 = vadd.f32 %v513, %v543
        %v552 = vadd.f32 %v514, %v544
        %v553 = vadd.f32 %v515, %v545
        %v554 = vadd.f32 %v516, %v546
        %v555 = vadd.f32 %v517, %v547
        %v556 = vadd.f32 %v518, %v548
        %557 = vset.pattern.permute.xlu0 2
        %558 = vperm.xlu0 %557, %v448
        %v559 = vpop.permute.xlu0 %558
        %561 = vset.pattern.permute.xlu0 2
        %562 = vperm.xlu0 %561, %v449
        %v563 = vpop.permute.xlu0 %562
        %565 = vset.pattern.permute.xlu0 2
        %566 = vperm.xlu0 %565, %v450
        %v567 = vpop.permute.xlu0 %566
        %569 = vset.pattern.permute.xlu0 2
        %570 = vperm.xlu0 %569, %v451
        %v571 = vpop.permute.xlu0 %570
        %v573 = vperm.slane %v447, 2
        %v574 = vperm.slane %v447, 6
        %v577 = vperm.slane %v573, 2
        %v578 = vperm.slane %v574, 2
        %v579 = vmul.f32 %v559, %v577
        %v580 = vmul.f32 %v559, %v578
        %v581 = vmul.f32 %v563, %v577
        %v582 = vmul.f32 %v563, %v578
        %v583 = vmul.f32 %v567, %v577
        %v584 = vmul.f32 %v567, %v578
        %v585 = vmul.f32 %v571, %v577
        %v586 = vmul.f32 %v571, %v578
        %v587 = vadd.f32 %v549, %v579
        %v588 = vadd.f32 %v550, %v580
        %v589 = vadd.f32 %v551, %v581
        %v590 = vadd.f32 %v552, %v582
        %v591 = vadd.f32 %v553, %v583
        %v592 = vadd.f32 %v554, %v584
        %v593 = vadd.f32 %v555, %v585
        %v594 = vadd.f32 %v556, %v586
        %v595 = vmax.f32 %v587, 0.0
        %v596 = vmax.f32 %v588, 0.0
        %v597 = vmax.f32 %v589, 0.0
        %v598 = vmax.f32 %v590, 0.0
        %v599 = vmax.f32 %v591, 0.0
        %v600 = vmax.f32 %v592, 0.0
        %v601 = vmax.f32 %v593, 0.0
        %v602 = vmax.f32 %v594, 0.0
        %v603 = vld [vmem:[#allocation13] sm:$0xff]
        %v604 = vld [vmem:[#allocation13 + $0x8] sm:$0xff]
        %v605 = vld [vmem:[#allocation13 + $0x10] sm:$0xff]
        %v606 = vld [vmem:[#allocation13 + $0x18] sm:$0xff]
        %v607 = vld [vmem:[#allocation15] sm:$0xff]
        %v608 = vld [vmem:[#allocation15 + $0x8] sm:$0xff]
        %v609 = vld [vmem:[#allocation15 + $0x10] sm:$0xff]
        %v610 = vld [vmem:[#allocation15 + $0x18] sm:$0xff]
        %612 = vset.pattern.permute.xlu0 0
        %613 = vperm.xlu0 %612, %v607
        %v614 = vpop.permute.xlu0 %613
        %617 = vset.pattern.permute.xlu0 0
        %618 = vperm.xlu0 %617, %v608
        %v619 = vpop.permute.xlu0 %618
        %622 = vset.pattern.permute.xlu0 0
        %623 = vperm.xlu0 %622, %v609
        %v624 = vpop.permute.xlu0 %623
        %627 = vset.pattern.permute.xlu0 0
        %628 = vperm.xlu0 %627, %v610
        %v629 = vpop.permute.xlu0 %628
        %vm631 = vcmask 261120
        %v633 = vsel %vm631, %v603, 0
        %v636 = vsel %vm631, %v604, 0
        %v639 = vsel %vm631, %v605, 0
        %v642 = vsel %vm631, %v606, 0
        %644 = vmatpush.msra.mxu0 0.0
        %645 = vmatpush.msra.mxu0 0.0
        %646 = vmatpush.msra.mxu0 0.0
        %647 = vmatpush.msra.mxu0 0.0
        %648 = vmatpush.msra.mxu0 0.0
        %649 = vmatpush.msra.mxu0 0.0
        %650 = vmatpush.msra.mxu0 0.0
        %651 = vmatpush.msra.mxu0 0.0
        %652 = vmatpush.msra.mxu0 0.0
        %653 = vmatpush.msra.mxu0 0.0
        %654 = vmatpush.msra.mxu0 0.0
        %655 = vmatpush.msra.mxu0 0.0
        %v656 = vand.u32 %v601, 4294901760
        %657 = vmatpush.msra.mxu0 %v656
        %v658 = vand.u32 %v599, 4294901760
        %659 = vmatpush.msra.mxu0 %v658
        %v660 = vand.u32 %v597, 4294901760
        %661 = vmatpush.msra.mxu0 %v660
        %v662 = vand.u32 %v595, 4294901760
        %663 = vmatpush.msra.mxu0 %v662
        %v664 = vand.u32 %v633, 4294901760
        %v665 = vsub.f32 %v633, %v664
        %v666 = vand.u32 %v665, 4294901760
        %v667 = vsub.f32 %v665, %v666
        %v668 = vand.u32 %v667, 4294901760
        %669 = vmatmul.f32.gmra.mxu0 %v668
        %v670 = vpop.f32.mrf.mxu0
        %v671 = vadd.f32 %v614, %v670
        %v672 = vand.u32 %v636, 4294901760
        %v673 = vsub.f32 %v636, %v672
        %v674 = vand.u32 %v673, 4294901760
        %v675 = vsub.f32 %v673, %v674
        %v676 = vand.u32 %v675, 4294901760
        %677 = vmatmul.f32.gmra.mxu0 %v676
        %v678 = vpop.f32.mrf.mxu0
        %v679 = vadd.f32 %v619, %v678
        %v680 = vand.u32 %v639, 4294901760
        %v681 = vsub.f32 %v639, %v680
        %v682 = vand.u32 %v681, 4294901760
        %v683 = vsub.f32 %v681, %v682
        %v684 = vand.u32 %v683, 4294901760
        %685 = vmatmul.f32.gmra.mxu0 %v684
        %v686 = vpop.f32.mrf.mxu0
        %v687 = vadd.f32 %v624, %v686
        %v688 = vand.u32 %v642, 4294901760
        %v689 = vsub.f32 %v642, %v688
        %v690 = vand.u32 %v689, 4294901760
        %v691 = vsub.f32 %v689, %v690
        %v692 = vand.u32 %v691, 4294901760
        %693 = vmatmul.f32.gmra.mxu0 %v692
        %v694 = vpop.f32.mrf.mxu0
        %v695 = vadd.f32 %v629, %v694
        %696 = vdwg.mxu0
        %697 = vmatpush.msra.mxu0 0.0
        %698 = vmatpush.msra.mxu0 0.0
        %699 = vmatpush.msra.mxu0 0.0
        %700 = vmatpush.msra.mxu0 0.0
        %701 = vmatpush.msra.mxu0 0.0
        %702 = vmatpush.msra.mxu0 0.0
        %703 = vmatpush.msra.mxu0 0.0
        %704 = vmatpush.msra.mxu0 0.0
        %705 = vmatpush.msra.mxu0 0.0
        %706 = vmatpush.msra.mxu0 0.0
        %707 = vmatpush.msra.mxu0 0.0
        %708 = vmatpush.msra.mxu0 0.0
        %v709 = vand.u32 %v601, 4294901760
        %v710 = vsub.f32 %v601, %v709
        %v711 = vand.u32 %v710, 4294901760
        %v712 = vsub.f32 %v710, %v711
        %v713 = vand.u32 %v712, 4294901760
        %714 = vmatpush.msra.mxu0 %v713
        %v715 = vand.u32 %v599, 4294901760
        %v716 = vsub.f32 %v599, %v715
        %v717 = vand.u32 %v716, 4294901760
        %v718 = vsub.f32 %v716, %v717
        %v719 = vand.u32 %v718, 4294901760
        %720 = vmatpush.msra.mxu0 %v719
        %v721 = vand.u32 %v597, 4294901760
        %v722 = vsub.f32 %v597, %v721
        %v723 = vand.u32 %v722, 4294901760
        %v724 = vsub.f32 %v722, %v723
        %v725 = vand.u32 %v724, 4294901760
        %726 = vmatpush.msra.mxu0 %v725
        %v727 = vand.u32 %v595, 4294901760
        %v728 = vsub.f32 %v595, %v727
        %v729 = vand.u32 %v728, 4294901760
        %v730 = vsub.f32 %v728, %v729
        %v731 = vand.u32 %v730, 4294901760
        %732 = vmatpush.msra.mxu0 %v731
        %v733 = vand.u32 %v633, 4294901760
        %734 = vmatmul.f32.gmra.mxu0 %v733
        %v735 = vpop.f32.mrf.mxu0
        %v736 = vadd.f32 %v671, %v735
        %v737 = vand.u32 %v636, 4294901760
        %738 = vmatmul.f32.gmra.mxu0 %v737
        %v739 = vpop.f32.mrf.mxu0
        %v740 = vadd.f32 %v679, %v739
        %v741 = vand.u32 %v639, 4294901760
        %742 = vmatmul.f32.gmra.mxu0 %v741
        %v743 = vpop.f32.mrf.mxu0
        %v744 = vadd.f32 %v687, %v743
        %v745 = vand.u32 %v642, 4294901760
        %746 = vmatmul.f32.gmra.mxu0 %v745
        %v747 = vpop.f32.mrf.mxu0
        %v748 = vadd.f32 %v695, %v747
        %749 = vdwg.mxu0
        %750 = vmatpush.msra.mxu0 0.0
        %751 = vmatpush.msra.mxu0 0.0
        %752 = vmatpush.msra.mxu0 0.0
        %753 = vmatpush.msra.mxu0 0.0
        %754 = vmatpush.msra.mxu0 0.0
        %755 = vmatpush.msra.mxu0 0.0
        %756 = vmatpush.msra.mxu0 0.0
        %757 = vmatpush.msra.mxu0 0.0
        %758 = vmatpush.msra.mxu0 0.0
        %759 = vmatpush.msra.mxu0 0.0
        %760 = vmatpush.msra.mxu0 0.0
        %761 = vmatpush.msra.mxu0 0.0
        %v762 = vand.u32 %v601, 4294901760
        %v763 = vsub.f32 %v601, %v762
        %764 = vmatpush.msra.mxu0 %v763
        %v765 = vand.u32 %v599, 4294901760
        %v766 = vsub.f32 %v599, %v765
        %767 = vmatpush.msra.mxu0 %v766
        %v768 = vand.u32 %v597, 4294901760
        %v769 = vsub.f32 %v597, %v768
        %770 = vmatpush.msra.mxu0 %v769
        %v771 = vand.u32 %v595, 4294901760
        %v772 = vsub.f32 %v595, %v771
        %773 = vmatpush.msra.mxu0 %v772
        %v774 = vand.u32 %v633, 4294901760
        %v775 = vsub.f32 %v633, %v774
        %776 = vmatmul.f32.gmra.mxu0 %v775
        %v777 = vpop.f32.mrf.mxu0
        %v778 = vadd.f32 %v736, %v777
        %v779 = vand.u32 %v636, 4294901760
        %v780 = vsub.f32 %v636, %v779
        %781 = vmatmul.f32.gmra.mxu0 %v780
        %v782 = vpop.f32.mrf.mxu0
        %v783 = vadd.f32 %v740, %v782
        %v784 = vand.u32 %v639, 4294901760
        %v785 = vsub.f32 %v639, %v784
        %786 = vmatmul.f32.gmra.mxu0 %v785
        %v787 = vpop.f32.mrf.mxu0
        %v788 = vadd.f32 %v744, %v787
        %v789 = vand.u32 %v642, 4294901760
        %v790 = vsub.f32 %v642, %v789
        %791 = vmatmul.f32.gmra.mxu0 %v790
        %v792 = vpop.f32.mrf.mxu0
        %v793 = vadd.f32 %v748, %v792
        %794 = vdwg.mxu0
        %795 = vmatpush.msra.mxu0 0.0
        %796 = vmatpush.msra.mxu0 0.0
        %797 = vmatpush.msra.mxu0 0.0
        %798 = vmatpush.msra.mxu0 0.0
        %799 = vmatpush.msra.mxu0 0.0
        %800 = vmatpush.msra.mxu0 0.0
        %801 = vmatpush.msra.mxu0 0.0
        %802 = vmatpush.msra.mxu0 0.0
        %803 = vmatpush.msra.mxu0 0.0
        %804 = vmatpush.msra.mxu0 0.0
        %805 = vmatpush.msra.mxu0 0.0
        %806 = vmatpush.msra.mxu0 0.0
        %v807 = vand.u32 %v601, 4294901760
        %808 = vmatpush.msra.mxu0 %v807
        %v809 = vand.u32 %v599, 4294901760
        %810 = vmatpush.msra.mxu0 %v809
        %v811 = vand.u32 %v597, 4294901760
        %812 = vmatpush.msra.mxu0 %v811
        %v813 = vand.u32 %v595, 4294901760
        %814 = vmatpush.msra.mxu0 %v813
        %v815 = vand.u32 %v633, 4294901760
        %v816 = vsub.f32 %v633, %v815
        %v817 = vand.u32 %v816, 4294901760
        %818 = vmatmul.f32.gmra.mxu0 %v817
        %v819 = vpop.f32.mrf.mxu0
        %v820 = vadd.f32 %v778, %v819
        %v821 = vand.u32 %v636, 4294901760
        %v822 = vsub.f32 %v636, %v821
        %v823 = vand.u32 %v822, 4294901760
        %824 = vmatmul.f32.gmra.mxu0 %v823
        %v825 = vpop.f32.mrf.mxu0
        %v826 = vadd.f32 %v783, %v825
        %v827 = vand.u32 %v639, 4294901760
        %v828 = vsub.f32 %v639, %v827
        %v829 = vand.u32 %v828, 4294901760
        %830 = vmatmul.f32.gmra.mxu0 %v829
        %v831 = vpop.f32.mrf.mxu0
        %v832 = vadd.f32 %v788, %v831
        %v833 = vand.u32 %v642, 4294901760
        %v834 = vsub.f32 %v642, %v833
        %v835 = vand.u32 %v834, 4294901760
        %836 = vmatmul.f32.gmra.mxu0 %v835
        %v837 = vpop.f32.mrf.mxu0
        %v838 = vadd.f32 %v793, %v837
        %839 = vdwg.mxu0
        %840 = vmatpush.msra.mxu0 0.0
        %841 = vmatpush.msra.mxu0 0.0
        %842 = vmatpush.msra.mxu0 0.0
        %843 = vmatpush.msra.mxu0 0.0
        %844 = vmatpush.msra.mxu0 0.0
        %845 = vmatpush.msra.mxu0 0.0
        %846 = vmatpush.msra.mxu0 0.0
        %847 = vmatpush.msra.mxu0 0.0
        %848 = vmatpush.msra.mxu0 0.0
        %849 = vmatpush.msra.mxu0 0.0
        %850 = vmatpush.msra.mxu0 0.0
        %851 = vmatpush.msra.mxu0 0.0
        %v852 = vand.u32 %v601, 4294901760
        %v853 = vsub.f32 %v601, %v852
        %v854 = vand.u32 %v853, 4294901760
        %855 = vmatpush.msra.mxu0 %v854
        %v856 = vand.u32 %v599, 4294901760
        %v857 = vsub.f32 %v599, %v856
        %v858 = vand.u32 %v857, 4294901760
        %859 = vmatpush.msra.mxu0 %v858
        %v860 = vand.u32 %v597, 4294901760
        %v861 = vsub.f32 %v597, %v860
        %v862 = vand.u32 %v861, 4294901760
        %863 = vmatpush.msra.mxu0 %v862
        %v864 = vand.u32 %v595, 4294901760
        %v865 = vsub.f32 %v595, %v864
        %v866 = vand.u32 %v865, 4294901760
        %867 = vmatpush.msra.mxu0 %v866
        %v868 = vand.u32 %v633, 4294901760
        %869 = vmatmul.f32.gmra.mxu0 %v868
        %v870 = vpop.f32.mrf.mxu0
        %v871 = vadd.f32 %v820, %v870
        %v872 = vand.u32 %v636, 4294901760
        %873 = vmatmul.f32.gmra.mxu0 %v872
        %v874 = vpop.f32.mrf.mxu0
        %v875 = vadd.f32 %v826, %v874
        %v876 = vand.u32 %v639, 4294901760
        %877 = vmatmul.f32.gmra.mxu0 %v876
        %v878 = vpop.f32.mrf.mxu0
        %v879 = vadd.f32 %v832, %v878
        %v880 = vand.u32 %v642, 4294901760
        %881 = vmatmul.f32.gmra.mxu0 %v880
        %v882 = vpop.f32.mrf.mxu0
        %v883 = vadd.f32 %v838, %v882
        %884 = vdwg.mxu0
        %885 = vmatpush.msra.mxu0 0.0
        %886 = vmatpush.msra.mxu0 0.0
        %887 = vmatpush.msra.mxu0 0.0
        %888 = vmatpush.msra.mxu0 0.0
        %889 = vmatpush.msra.mxu0 0.0
        %890 = vmatpush.msra.mxu0 0.0
        %891 = vmatpush.msra.mxu0 0.0
        %892 = vmatpush.msra.mxu0 0.0
        %893 = vmatpush.msra.mxu0 0.0
        %894 = vmatpush.msra.mxu0 0.0
        %895 = vmatpush.msra.mxu0 0.0
        %896 = vmatpush.msra.mxu0 0.0
        %v897 = vand.u32 %v601, 4294901760
        %898 = vmatpush.msra.mxu0 %v897
        %v899 = vand.u32 %v599, 4294901760
        %900 = vmatpush.msra.mxu0 %v899
        %v901 = vand.u32 %v597, 4294901760
        %902 = vmatpush.msra.mxu0 %v901
        %v903 = vand.u32 %v595, 4294901760
        %904 = vmatpush.msra.mxu0 %v903
        %v905 = vand.u32 %v633, 4294901760
        %906 = vmatmul.f32.gmra.mxu0 %v905
        %v907 = vpop.f32.mrf.mxu0
        %v908 = vadd.f32 %v871, %v907
        %v909 = vand.u32 %v636, 4294901760
        %910 = vmatmul.f32.gmra.mxu0 %v909
        %v911 = vpop.f32.mrf.mxu0
        %v912 = vadd.f32 %v875, %v911
        %v913 = vand.u32 %v639, 4294901760
        %914 = vmatmul.f32.gmra.mxu0 %v913
        %v915 = vpop.f32.mrf.mxu0
        %v916 = vadd.f32 %v879, %v915
        %v917 = vand.u32 %v642, 4294901760
        %918 = vmatmul.f32.gmra.mxu0 %v917
        %v919 = vpop.f32.mrf.mxu0
        %v920 = vadd.f32 %v883, %v919
        %921 = vdwg.mxu0
        %922 = vmatpush.msra.mxu0 0.0
        %923 = vmatpush.msra.mxu0 0.0
        %924 = vmatpush.msra.mxu0 0.0
        %925 = vmatpush.msra.mxu0 0.0
        %926 = vmatpush.msra.mxu0 0.0
        %927 = vmatpush.msra.mxu0 0.0
        %928 = vmatpush.msra.mxu0 0.0
        %929 = vmatpush.msra.mxu0 0.0
        %930 = vmatpush.msra.mxu0 0.0
        %931 = vmatpush.msra.mxu0 0.0
        %932 = vmatpush.msra.mxu0 0.0
        %933 = vmatpush.msra.mxu0 0.0
        %v934 = vand.u32 %v602, 4294901760
        %935 = vmatpush.msra.mxu0 %v934
        %v936 = vand.u32 %v600, 4294901760
        %937 = vmatpush.msra.mxu0 %v936
        %v938 = vand.u32 %v598, 4294901760
        %939 = vmatpush.msra.mxu0 %v938
        %v940 = vand.u32 %v596, 4294901760
        %941 = vmatpush.msra.mxu0 %v940
        %v942 = vand.u32 %v633, 4294901760
        %v943 = vsub.f32 %v633, %v942
        %v944 = vand.u32 %v943, 4294901760
        %v945 = vsub.f32 %v943, %v944
        %v946 = vand.u32 %v945, 4294901760
        %947 = vmatmul.f32.gmra.mxu0 %v946
        %v948 = vpop.f32.mrf.mxu0
        %v949 = vadd.f32 %v614, %v948
        %v950 = vand.u32 %v636, 4294901760
        %v951 = vsub.f32 %v636, %v950
        %v952 = vand.u32 %v951, 4294901760
        %v953 = vsub.f32 %v951, %v952
        %v954 = vand.u32 %v953, 4294901760
        %955 = vmatmul.f32.gmra.mxu0 %v954
        %v956 = vpop.f32.mrf.mxu0
        %v957 = vadd.f32 %v619, %v956
        %v958 = vand.u32 %v639, 4294901760
        %v959 = vsub.f32 %v639, %v958
        %v960 = vand.u32 %v959, 4294901760
        %v961 = vsub.f32 %v959, %v960
        %v962 = vand.u32 %v961, 4294901760
        %963 = vmatmul.f32.gmra.mxu0 %v962
        %v964 = vpop.f32.mrf.mxu0
        %v965 = vadd.f32 %v624, %v964
        %v966 = vand.u32 %v642, 4294901760
        %v967 = vsub.f32 %v642, %v966
        %v968 = vand.u32 %v967, 4294901760
        %v969 = vsub.f32 %v967, %v968
        %v970 = vand.u32 %v969, 4294901760
        %971 = vmatmul.f32.gmra.mxu0 %v970
        %v972 = vpop.f32.mrf.mxu0
        %v973 = vadd.f32 %v629, %v972
        %974 = vdwg.mxu0
        %975 = vmatpush.msra.mxu0 0.0
        %976 = vmatpush.msra.mxu0 0.0
        %977 = vmatpush.msra.mxu0 0.0
        %978 = vmatpush.msra.mxu0 0.0
        %979 = vmatpush.msra.mxu0 0.0
        %980 = vmatpush.msra.mxu0 0.0
        %981 = vmatpush.msra.mxu0 0.0
        %982 = vmatpush.msra.mxu0 0.0
        %983 = vmatpush.msra.mxu0 0.0
        %984 = vmatpush.msra.mxu0 0.0
        %985 = vmatpush.msra.mxu0 0.0
        %986 = vmatpush.msra.mxu0 0.0
        %v987 = vand.u32 %v602, 4294901760
        %v988 = vsub.f32 %v602, %v987
        %v989 = vand.u32 %v988, 4294901760
        %v990 = vsub.f32 %v988, %v989
        %v991 = vand.u32 %v990, 4294901760
        %992 = vmatpush.msra.mxu0 %v991
        %v993 = vand.u32 %v600, 4294901760
        %v994 = vsub.f32 %v600, %v993
        %v995 = vand.u32 %v994, 4294901760
        %v996 = vsub.f32 %v994, %v995
        %v997 = vand.u32 %v996, 4294901760
        %998 = vmatpush.msra.mxu0 %v997
        %v999 = vand.u32 %v598, 4294901760
        %v1000 = vsub.f32 %v598, %v999
        %v1001 = vand.u32 %v1000, 4294901760
        %v1002 = vsub.f32 %v1000, %v1001
        %v1003 = vand.u32 %v1002, 4294901760
        %1004 = vmatpush.msra.mxu0 %v1003
        %v1005 = vand.u32 %v596, 4294901760
        %v1006 = vsub.f32 %v596, %v1005
        %v1007 = vand.u32 %v1006, 4294901760
        %v1008 = vsub.f32 %v1006, %v1007
        %v1009 = vand.u32 %v1008, 4294901760
        %1010 = vmatpush.msra.mxu0 %v1009
        %v1011 = vand.u32 %v633, 4294901760
        %1012 = vmatmul.f32.gmra.mxu0 %v1011
        %v1013 = vpop.f32.mrf.mxu0
        %v1014 = vadd.f32 %v949, %v1013
        %v1015 = vand.u32 %v636, 4294901760
        %1016 = vmatmul.f32.gmra.mxu0 %v1015
        %v1017 = vpop.f32.mrf.mxu0
        %v1018 = vadd.f32 %v957, %v1017
        %v1019 = vand.u32 %v639, 4294901760
        %1020 = vmatmul.f32.gmra.mxu0 %v1019
        %v1021 = vpop.f32.mrf.mxu0
        %v1022 = vadd.f32 %v965, %v1021
        %v1023 = vand.u32 %v642, 4294901760
        %1024 = vmatmul.f32.gmra.mxu0 %v1023
        %v1025 = vpop.f32.mrf.mxu0
        %v1026 = vadd.f32 %v973, %v1025
        %1027 = vdwg.mxu0
        %1028 = vmatpush.msra.mxu0 0.0
        %1029 = vmatpush.msra.mxu0 0.0
        %1030 = vmatpush.msra.mxu0 0.0
        %1031 = vmatpush.msra.mxu0 0.0
        %1032 = vmatpush.msra.mxu0 0.0
        %1033 = vmatpush.msra.mxu0 0.0
        %1034 = vmatpush.msra.mxu0 0.0
        %1035 = vmatpush.msra.mxu0 0.0
        %1036 = vmatpush.msra.mxu0 0.0
        %1037 = vmatpush.msra.mxu0 0.0
        %1038 = vmatpush.msra.mxu0 0.0
        %1039 = vmatpush.msra.mxu0 0.0
        %v1040 = vand.u32 %v602, 4294901760
        %v1041 = vsub.f32 %v602, %v1040
        %1042 = vmatpush.msra.mxu0 %v1041
        %v1043 = vand.u32 %v600, 4294901760
        %v1044 = vsub.f32 %v600, %v1043
        %1045 = vmatpush.msra.mxu0 %v1044
        %v1046 = vand.u32 %v598, 4294901760
        %v1047 = vsub.f32 %v598, %v1046
        %1048 = vmatpush.msra.mxu0 %v1047
        %v1049 = vand.u32 %v596, 4294901760
        %v1050 = vsub.f32 %v596, %v1049
        %1051 = vmatpush.msra.mxu0 %v1050
        %v1052 = vand.u32 %v633, 4294901760
        %v1053 = vsub.f32 %v633, %v1052
        %1054 = vmatmul.f32.gmra.mxu0 %v1053
        %v1055 = vpop.f32.mrf.mxu0
        %v1056 = vadd.f32 %v1014, %v1055
        %v1057 = vand.u32 %v636, 4294901760
        %v1058 = vsub.f32 %v636, %v1057
        %1059 = vmatmul.f32.gmra.mxu0 %v1058
        %v1060 = vpop.f32.mrf.mxu0
        %v1061 = vadd.f32 %v1018, %v1060
        %v1062 = vand.u32 %v639, 4294901760
        %v1063 = vsub.f32 %v639, %v1062
        %1064 = vmatmul.f32.gmra.mxu0 %v1063
        %v1065 = vpop.f32.mrf.mxu0
        %v1066 = vadd.f32 %v1022, %v1065
        %v1067 = vand.u32 %v642, 4294901760
        %v1068 = vsub.f32 %v642, %v1067
        %1069 = vmatmul.f32.gmra.mxu0 %v1068
        %v1070 = vpop.f32.mrf.mxu0
        %v1071 = vadd.f32 %v1026, %v1070
        %1072 = vdwg.mxu0
        %1073 = vmatpush.msra.mxu0 0.0
        %1074 = vmatpush.msra.mxu0 0.0
        %1075 = vmatpush.msra.mxu0 0.0
        %1076 = vmatpush.msra.mxu0 0.0
        %1077 = vmatpush.msra.mxu0 0.0
        %1078 = vmatpush.msra.mxu0 0.0
        %1079 = vmatpush.msra.mxu0 0.0
        %1080 = vmatpush.msra.mxu0 0.0
        %1081 = vmatpush.msra.mxu0 0.0
        %1082 = vmatpush.msra.mxu0 0.0
        %1083 = vmatpush.msra.mxu0 0.0
        %1084 = vmatpush.msra.mxu0 0.0
        %v1085 = vand.u32 %v602, 4294901760
        %1086 = vmatpush.msra.mxu0 %v1085
        %v1087 = vand.u32 %v600, 4294901760
        %1088 = vmatpush.msra.mxu0 %v1087
        %v1089 = vand.u32 %v598, 4294901760
        %1090 = vmatpush.msra.mxu0 %v1089
        %v1091 = vand.u32 %v596, 4294901760
        %1092 = vmatpush.msra.mxu0 %v1091
        %v1093 = vand.u32 %v633, 4294901760
        %v1094 = vsub.f32 %v633, %v1093
        %v1095 = vand.u32 %v1094, 4294901760
        %1096 = vmatmul.f32.gmra.mxu0 %v1095
        %v1097 = vpop.f32.mrf.mxu0
        %v1098 = vadd.f32 %v1056, %v1097
        %v1099 = vand.u32 %v636, 4294901760
        %v1100 = vsub.f32 %v636, %v1099
        %v1101 = vand.u32 %v1100, 4294901760
        %1102 = vmatmul.f32.gmra.mxu0 %v1101
        %v1103 = vpop.f32.mrf.mxu0
        %v1104 = vadd.f32 %v1061, %v1103
        %v1105 = vand.u32 %v639, 4294901760
        %v1106 = vsub.f32 %v639, %v1105
        %v1107 = vand.u32 %v1106, 4294901760
        %1108 = vmatmul.f32.gmra.mxu0 %v1107
        %v1109 = vpop.f32.mrf.mxu0
        %v1110 = vadd.f32 %v1066, %v1109
        %v1111 = vand.u32 %v642, 4294901760
        %v1112 = vsub.f32 %v642, %v1111
        %v1113 = vand.u32 %v1112, 4294901760
        %1114 = vmatmul.f32.gmra.mxu0 %v1113
        %v1115 = vpop.f32.mrf.mxu0
        %v1116 = vadd.f32 %v1071, %v1115
        %1117 = vdwg.mxu0
        %1118 = vmatpush.msra.mxu0 0.0
        %1119 = vmatpush.msra.mxu0 0.0
        %1120 = vmatpush.msra.mxu0 0.0
        %1121 = vmatpush.msra.mxu0 0.0
        %1122 = vmatpush.msra.mxu0 0.0
        %1123 = vmatpush.msra.mxu0 0.0
        %1124 = vmatpush.msra.mxu0 0.0
        %1125 = vmatpush.msra.mxu0 0.0
        %1126 = vmatpush.msra.mxu0 0.0
        %1127 = vmatpush.msra.mxu0 0.0
        %1128 = vmatpush.msra.mxu0 0.0
        %1129 = vmatpush.msra.mxu0 0.0
        %v1130 = vand.u32 %v602, 4294901760
        %v1131 = vsub.f32 %v602, %v1130
        %v1132 = vand.u32 %v1131, 4294901760
        %1133 = vmatpush.msra.mxu0 %v1132
        %v1134 = vand.u32 %v600, 4294901760
        %v1135 = vsub.f32 %v600, %v1134
        %v1136 = vand.u32 %v1135, 4294901760
        %1137 = vmatpush.msra.mxu0 %v1136
        %v1138 = vand.u32 %v598, 4294901760
        %v1139 = vsub.f32 %v598, %v1138
        %v1140 = vand.u32 %v1139, 4294901760
        %1141 = vmatpush.msra.mxu0 %v1140
        %v1142 = vand.u32 %v596, 4294901760
        %v1143 = vsub.f32 %v596, %v1142
        %v1144 = vand.u32 %v1143, 4294901760
        %1145 = vmatpush.msra.mxu0 %v1144
        %v1146 = vand.u32 %v633, 4294901760
        %1147 = vmatmul.f32.gmra.mxu0 %v1146
        %v1148 = vpop.f32.mrf.mxu0
        %v1149 = vadd.f32 %v1098, %v1148
        %v1150 = vand.u32 %v636, 4294901760
        %1151 = vmatmul.f32.gmra.mxu0 %v1150
        %v1152 = vpop.f32.mrf.mxu0
        %v1153 = vadd.f32 %v1104, %v1152
        %v1154 = vand.u32 %v639, 4294901760
        %1155 = vmatmul.f32.gmra.mxu0 %v1154
        %v1156 = vpop.f32.mrf.mxu0
        %v1157 = vadd.f32 %v1110, %v1156
        %v1158 = vand.u32 %v642, 4294901760
        %1159 = vmatmul.f32.gmra.mxu0 %v1158
        %v1160 = vpop.f32.mrf.mxu0
        %v1161 = vadd.f32 %v1116, %v1160
        %1162 = vdwg.mxu0
        %1163 = vmatpush.msra.mxu0 0.0
        %1164 = vmatpush.msra.mxu0 0.0
        %1165 = vmatpush.msra.mxu0 0.0
        %1166 = vmatpush.msra.mxu0 0.0
        %1167 = vmatpush.msra.mxu0 0.0
        %1168 = vmatpush.msra.mxu0 0.0
        %1169 = vmatpush.msra.mxu0 0.0
        %1170 = vmatpush.msra.mxu0 0.0
        %1171 = vmatpush.msra.mxu0 0.0
        %1172 = vmatpush.msra.mxu0 0.0
        %1173 = vmatpush.msra.mxu0 0.0
        %1174 = vmatpush.msra.mxu0 0.0
        %v1175 = vand.u32 %v602, 4294901760
        %1176 = vmatpush.msra.mxu0 %v1175
        %v1177 = vand.u32 %v600, 4294901760
        %1178 = vmatpush.msra.mxu0 %v1177
        %v1179 = vand.u32 %v598, 4294901760
        %1180 = vmatpush.msra.mxu0 %v1179
        %v1181 = vand.u32 %v596, 4294901760
        %1182 = vmatpush.msra.mxu0 %v1181
        %v1183 = vand.u32 %v633, 4294901760
        %1184 = vmatmul.f32.gmra.mxu0 %v1183
        %v1185 = vpop.f32.mrf.mxu0
        %v1186 = vadd.f32 %v1149, %v1185
        %v1187 = vand.u32 %v636, 4294901760
        %1188 = vmatmul.f32.gmra.mxu0 %v1187
        %v1189 = vpop.f32.mrf.mxu0
        %v1190 = vadd.f32 %v1153, %v1189
        %v1191 = vand.u32 %v639, 4294901760
        %1192 = vmatmul.f32.gmra.mxu0 %v1191
        %v1193 = vpop.f32.mrf.mxu0
        %v1194 = vadd.f32 %v1157, %v1193
        %v1195 = vand.u32 %v642, 4294901760
        %1196 = vmatmul.f32.gmra.mxu0 %v1195
        %v1197 = vpop.f32.mrf.mxu0
        %v1198 = vadd.f32 %v1161, %v1197
        %1199 = vdwg.mxu0
        %v1200 = vmax.f32 %v908, 0.0
        %v1201 = vmax.f32 %v1186, 0.0
        %v1202 = vmax.f32 %v912, 0.0
        %v1203 = vmax.f32 %v1190, 0.0
        %v1204 = vmax.f32 %v916, 0.0
        %v1205 = vmax.f32 %v1194, 0.0
        %v1206 = vmax.f32 %v920, 0.0
        %v1207 = vmax.f32 %v1198, 0.0
        %v1208 = vld [vmem:[#allocation16] sm:$0x7]
        %v1209 = vld [vmem:[#allocation18] sm:$0x7]
        %1211 = vset.pattern.permute.xlu0 0
        %1212 = vperm.xlu0 %1211, %v1209
        %v1213 = vpop.permute.xlu0 %1212
        %v1216 = vsel %vm631, %v1208, 0
        %1218 = vmatpush.msra.mxu0 0.0
        %1219 = vmatpush.msra.mxu0 0.0
        %1220 = vmatpush.msra.mxu0 0.0
        %1221 = vmatpush.msra.mxu0 0.0
        %1222 = vmatpush.msra.mxu0 0.0
        %1223 = vmatpush.msra.mxu0 0.0
        %1224 = vmatpush.msra.mxu0 0.0
        %1225 = vmatpush.msra.mxu0 0.0
        %1226 = vmatpush.msra.mxu0 0.0
        %1227 = vmatpush.msra.mxu0 0.0
        %1228 = vmatpush.msra.mxu0 0.0
        %1229 = vmatpush.msra.mxu0 0.0
        %v1230 = vand.u32 %v1206, 4294901760
        %1231 = vmatpush.msra.mxu0 %v1230
        %v1232 = vand.u32 %v1204, 4294901760
        %1233 = vmatpush.msra.mxu0 %v1232
        %v1234 = vand.u32 %v1202, 4294901760
        %1235 = vmatpush.msra.mxu0 %v1234
        %v1236 = vand.u32 %v1200, 4294901760
        %1237 = vmatpush.msra.mxu0 %v1236
        %v1238 = vand.u32 %v1216, 4294901760
        %v1239 = vsub.f32 %v1216, %v1238
        %v1240 = vand.u32 %v1239, 4294901760
        %v1241 = vsub.f32 %v1239, %v1240
        %v1242 = vand.u32 %v1241, 4294901760
        %1243 = vmatmul.f32.gmra.mxu0 %v1242
        %v1244 = vpop.f32.mrf.mxu0
        %v1245 = vadd.f32 %v1213, %v1244
        %1246 = vdwg.mxu0
        %1247 = vmatpush.msra.mxu0 0.0
        %1248 = vmatpush.msra.mxu0 0.0
        %1249 = vmatpush.msra.mxu0 0.0
        %1250 = vmatpush.msra.mxu0 0.0
        %1251 = vmatpush.msra.mxu0 0.0
        %1252 = vmatpush.msra.mxu0 0.0
        %1253 = vmatpush.msra.mxu0 0.0
        %1254 = vmatpush.msra.mxu0 0.0
        %1255 = vmatpush.msra.mxu0 0.0
        %1256 = vmatpush.msra.mxu0 0.0
        %1257 = vmatpush.msra.mxu0 0.0
        %1258 = vmatpush.msra.mxu0 0.0
        %v1259 = vand.u32 %v1206, 4294901760
        %v1260 = vsub.f32 %v1206, %v1259
        %v1261 = vand.u32 %v1260, 4294901760
        %v1262 = vsub.f32 %v1260, %v1261
        %v1263 = vand.u32 %v1262, 4294901760
        %1264 = vmatpush.msra.mxu0 %v1263
        %v1265 = vand.u32 %v1204, 4294901760
        %v1266 = vsub.f32 %v1204, %v1265
        %v1267 = vand.u32 %v1266, 4294901760
        %v1268 = vsub.f32 %v1266, %v1267
        %v1269 = vand.u32 %v1268, 4294901760
        %1270 = vmatpush.msra.mxu0 %v1269
        %v1271 = vand.u32 %v1202, 4294901760
        %v1272 = vsub.f32 %v1202, %v1271
        %v1273 = vand.u32 %v1272, 4294901760
        %v1274 = vsub.f32 %v1272, %v1273
        %v1275 = vand.u32 %v1274, 4294901760
        %1276 = vmatpush.msra.mxu0 %v1275
        %v1277 = vand.u32 %v1200, 4294901760
        %v1278 = vsub.f32 %v1200, %v1277
        %v1279 = vand.u32 %v1278, 4294901760
        %v1280 = vsub.f32 %v1278, %v1279
        %v1281 = vand.u32 %v1280, 4294901760
        %1282 = vmatpush.msra.mxu0 %v1281
        %v1283 = vand.u32 %v1216, 4294901760
        %1284 = vmatmul.f32.gmra.mxu0 %v1283
        %v1285 = vpop.f32.mrf.mxu0
        %v1286 = vadd.f32 %v1245, %v1285
        %1287 = vdwg.mxu0
        %1288 = vmatpush.msra.mxu0 0.0
        %1289 = vmatpush.msra.mxu0 0.0
        %1290 = vmatpush.msra.mxu0 0.0
        %1291 = vmatpush.msra.mxu0 0.0
        %1292 = vmatpush.msra.mxu0 0.0
        %1293 = vmatpush.msra.mxu0 0.0
        %1294 = vmatpush.msra.mxu0 0.0
        %1295 = vmatpush.msra.mxu0 0.0
        %1296 = vmatpush.msra.mxu0 0.0
        %1297 = vmatpush.msra.mxu0 0.0
        %1298 = vmatpush.msra.mxu0 0.0
        %1299 = vmatpush.msra.mxu0 0.0
        %v1300 = vand.u32 %v1206, 4294901760
        %v1301 = vsub.f32 %v1206, %v1300
        %1302 = vmatpush.msra.mxu0 %v1301
        %v1303 = vand.u32 %v1204, 4294901760
        %v1304 = vsub.f32 %v1204, %v1303
        %1305 = vmatpush.msra.mxu0 %v1304
        %v1306 = vand.u32 %v1202, 4294901760
        %v1307 = vsub.f32 %v1202, %v1306
        %1308 = vmatpush.msra.mxu0 %v1307
        %v1309 = vand.u32 %v1200, 4294901760
        %v1310 = vsub.f32 %v1200, %v1309
        %1311 = vmatpush.msra.mxu0 %v1310
        %v1312 = vand.u32 %v1216, 4294901760
        %v1313 = vsub.f32 %v1216, %v1312
        %1314 = vmatmul.f32.gmra.mxu0 %v1313
        %v1315 = vpop.f32.mrf.mxu0
        %v1316 = vadd.f32 %v1286, %v1315
        %1317 = vdwg.mxu0
        %1318 = vmatpush.msra.mxu0 0.0
        %1319 = vmatpush.msra.mxu0 0.0
        %1320 = vmatpush.msra.mxu0 0.0
        %1321 = vmatpush.msra.mxu0 0.0
        %1322 = vmatpush.msra.mxu0 0.0
        %1323 = vmatpush.msra.mxu0 0.0
        %1324 = vmatpush.msra.mxu0 0.0
        %1325 = vmatpush.msra.mxu0 0.0
        %1326 = vmatpush.msra.mxu0 0.0
        %1327 = vmatpush.msra.mxu0 0.0
        %1328 = vmatpush.msra.mxu0 0.0
        %1329 = vmatpush.msra.mxu0 0.0
        %v1330 = vand.u32 %v1206, 4294901760
        %1331 = vmatpush.msra.mxu0 %v1330
        %v1332 = vand.u32 %v1204, 4294901760
        %1333 = vmatpush.msra.mxu0 %v1332
        %v1334 = vand.u32 %v1202, 4294901760
        %1335 = vmatpush.msra.mxu0 %v1334
        %v1336 = vand.u32 %v1200, 4294901760
        %1337 = vmatpush.msra.mxu0 %v1336
        %v1338 = vand.u32 %v1216, 4294901760
        %v1339 = vsub.f32 %v1216, %v1338
        %v1340 = vand.u32 %v1339, 4294901760
        %1341 = vmatmul.f32.gmra.mxu0 %v1340
        %v1342 = vpop.f32.mrf.mxu0
        %v1343 = vadd.f32 %v1316, %v1342
        %1344 = vdwg.mxu0
        %1345 = vmatpush.msra.mxu0 0.0
        %1346 = vmatpush.msra.mxu0 0.0
        %1347 = vmatpush.msra.mxu0 0.0
        %1348 = vmatpush.msra.mxu0 0.0
        %1349 = vmatpush.msra.mxu0 0.0
        %1350 = vmatpush.msra.mxu0 0.0
        %1351 = vmatpush.msra.mxu0 0.0
        %1352 = vmatpush.msra.mxu0 0.0
        %1353 = vmatpush.msra.mxu0 0.0
        %1354 = vmatpush.msra.mxu0 0.0
        %1355 = vmatpush.msra.mxu0 0.0
        %1356 = vmatpush.msra.mxu0 0.0
        %v1357 = vand.u32 %v1206, 4294901760
        %v1358 = vsub.f32 %v1206, %v1357
        %v1359 = vand.u32 %v1358, 4294901760
        %1360 = vmatpush.msra.mxu0 %v1359
        %v1361 = vand.u32 %v1204, 4294901760
        %v1362 = vsub.f32 %v1204, %v1361
        %v1363 = vand.u32 %v1362, 4294901760
        %1364 = vmatpush.msra.mxu0 %v1363
        %v1365 = vand.u32 %v1202, 4294901760
        %v1366 = vsub.f32 %v1202, %v1365
        %v1367 = vand.u32 %v1366, 4294901760
        %1368 = vmatpush.msra.mxu0 %v1367
        %v1369 = vand.u32 %v1200, 4294901760
        %v1370 = vsub.f32 %v1200, %v1369
        %v1371 = vand.u32 %v1370, 4294901760
        %1372 = vmatpush.msra.mxu0 %v1371
        %v1373 = vand.u32 %v1216, 4294901760
        %1374 = vmatmul.f32.gmra.mxu0 %v1373
        %v1375 = vpop.f32.mrf.mxu0
        %v1376 = vadd.f32 %v1343, %v1375
        %1377 = vdwg.mxu0
        %1378 = vmatpush.msra.mxu0 0.0
        %1379 = vmatpush.msra.mxu0 0.0
        %1380 = vmatpush.msra.mxu0 0.0
        %1381 = vmatpush.msra.mxu0 0.0
        %1382 = vmatpush.msra.mxu0 0.0
        %1383 = vmatpush.msra.mxu0 0.0
        %1384 = vmatpush.msra.mxu0 0.0
        %1385 = vmatpush.msra.mxu0 0.0
        %1386 = vmatpush.msra.mxu0 0.0
        %1387 = vmatpush.msra.mxu0 0.0
        %1388 = vmatpush.msra.mxu0 0.0
        %1389 = vmatpush.msra.mxu0 0.0
        %v1390 = vand.u32 %v1206, 4294901760
        %1391 = vmatpush.msra.mxu0 %v1390
        %v1392 = vand.u32 %v1204, 4294901760
        %1393 = vmatpush.msra.mxu0 %v1392
        %v1394 = vand.u32 %v1202, 4294901760
        %1395 = vmatpush.msra.mxu0 %v1394
        %v1396 = vand.u32 %v1200, 4294901760
        %1397 = vmatpush.msra.mxu0 %v1396
        %v1398 = vand.u32 %v1216, 4294901760
        %1399 = vmatmul.f32.gmra.mxu0 %v1398
        %v1400 = vpop.f32.mrf.mxu0
        %v1401 = vadd.f32 %v1376, %v1400
        %1402 = vdwg.mxu0
        %1403 = vmatpush.msra.mxu0 0.0
        %1404 = vmatpush.msra.mxu0 0.0
        %1405 = vmatpush.msra.mxu0 0.0
        %1406 = vmatpush.msra.mxu0 0.0
        %1407 = vmatpush.msra.mxu0 0.0
        %1408 = vmatpush.msra.mxu0 0.0
        %1409 = vmatpush.msra.mxu0 0.0
        %1410 = vmatpush.msra.mxu0 0.0
        %1411 = vmatpush.msra.mxu0 0.0
        %1412 = vmatpush.msra.mxu0 0.0
        %1413 = vmatpush.msra.mxu0 0.0
        %1414 = vmatpush.msra.mxu0 0.0
        %v1415 = vand.u32 %v1207, 4294901760
        %1416 = vmatpush.msra.mxu0 %v1415
        %v1417 = vand.u32 %v1205, 4294901760
        %1418 = vmatpush.msra.mxu0 %v1417
        %v1419 = vand.u32 %v1203, 4294901760
        %1420 = vmatpush.msra.mxu0 %v1419
        %v1421 = vand.u32 %v1201, 4294901760
        %1422 = vmatpush.msra.mxu0 %v1421
        %v1423 = vand.u32 %v1216, 4294901760
        %v1424 = vsub.f32 %v1216, %v1423
        %v1425 = vand.u32 %v1424, 4294901760
        %v1426 = vsub.f32 %v1424, %v1425
        %v1427 = vand.u32 %v1426, 4294901760
        %1428 = vmatmul.f32.gmra.mxu0 %v1427
        %v1429 = vpop.f32.mrf.mxu0
        %v1430 = vadd.f32 %v1213, %v1429
        %1431 = vdwg.mxu0
        %1432 = vmatpush.msra.mxu0 0.0
        %1433 = vmatpush.msra.mxu0 0.0
        %1434 = vmatpush.msra.mxu0 0.0
        %1435 = vmatpush.msra.mxu0 0.0
        %1436 = vmatpush.msra.mxu0 0.0
        %1437 = vmatpush.msra.mxu0 0.0
        %1438 = vmatpush.msra.mxu0 0.0
        %1439 = vmatpush.msra.mxu0 0.0
        %1440 = vmatpush.msra.mxu0 0.0
        %1441 = vmatpush.msra.mxu0 0.0
        %1442 = vmatpush.msra.mxu0 0.0
        %1443 = vmatpush.msra.mxu0 0.0
        %v1444 = vand.u32 %v1207, 4294901760
        %v1445 = vsub.f32 %v1207, %v1444
        %v1446 = vand.u32 %v1445, 4294901760
        %v1447 = vsub.f32 %v1445, %v1446
        %v1448 = vand.u32 %v1447, 4294901760
        %1449 = vmatpush.msra.mxu0 %v1448
        %v1450 = vand.u32 %v1205, 4294901760
        %v1451 = vsub.f32 %v1205, %v1450
        %v1452 = vand.u32 %v1451, 4294901760
        %v1453 = vsub.f32 %v1451, %v1452
        %v1454 = vand.u32 %v1453, 4294901760
        %1455 = vmatpush.msra.mxu0 %v1454
        %v1456 = vand.u32 %v1203, 4294901760
        %v1457 = vsub.f32 %v1203, %v1456
        %v1458 = vand.u32 %v1457, 4294901760
        %v1459 = vsub.f32 %v1457, %v1458
        %v1460 = vand.u32 %v1459, 4294901760
        %1461 = vmatpush.msra.mxu0 %v1460
        %v1462 = vand.u32 %v1201, 4294901760
        %v1463 = vsub.f32 %v1201, %v1462
        %v1464 = vand.u32 %v1463, 4294901760
        %v1465 = vsub.f32 %v1463, %v1464
        %v1466 = vand.u32 %v1465, 4294901760
        %1467 = vmatpush.msra.mxu0 %v1466
        %v1468 = vand.u32 %v1216, 4294901760
        %1469 = vmatmul.f32.gmra.mxu0 %v1468
        %v1470 = vpop.f32.mrf.mxu0
        %v1471 = vadd.f32 %v1430, %v1470
        %1472 = vdwg.mxu0
        %1473 = vmatpush.msra.mxu0 0.0
        %1474 = vmatpush.msra.mxu0 0.0
        %1475 = vmatpush.msra.mxu0 0.0
        %1476 = vmatpush.msra.mxu0 0.0
        %1477 = vmatpush.msra.mxu0 0.0
        %1478 = vmatpush.msra.mxu0 0.0
        %1479 = vmatpush.msra.mxu0 0.0
        %1480 = vmatpush.msra.mxu0 0.0
        %1481 = vmatpush.msra.mxu0 0.0
        %1482 = vmatpush.msra.mxu0 0.0
        %1483 = vmatpush.msra.mxu0 0.0
        %1484 = vmatpush.msra.mxu0 0.0
        %v1485 = vand.u32 %v1207, 4294901760
        %v1486 = vsub.f32 %v1207, %v1485
        %1487 = vmatpush.msra.mxu0 %v1486
        %v1488 = vand.u32 %v1205, 4294901760
        %v1489 = vsub.f32 %v1205, %v1488
        %1490 = vmatpush.msra.mxu0 %v1489
        %v1491 = vand.u32 %v1203, 4294901760
        %v1492 = vsub.f32 %v1203, %v1491
        %1493 = vmatpush.msra.mxu0 %v1492
        %v1494 = vand.u32 %v1201, 4294901760
        %v1495 = vsub.f32 %v1201, %v1494
        %1496 = vmatpush.msra.mxu0 %v1495
        %v1497 = vand.u32 %v1216, 4294901760
        %v1498 = vsub.f32 %v1216, %v1497
        %1499 = vmatmul.f32.gmra.mxu0 %v1498
        %v1500 = vpop.f32.mrf.mxu0
        %v1501 = vadd.f32 %v1471, %v1500
        %1502 = vdwg.mxu0
        %1503 = vmatpush.msra.mxu0 0.0
        %1504 = vmatpush.msra.mxu0 0.0
        %1505 = vmatpush.msra.mxu0 0.0
        %1506 = vmatpush.msra.mxu0 0.0
        %1507 = vmatpush.msra.mxu0 0.0
        %1508 = vmatpush.msra.mxu0 0.0
        %1509 = vmatpush.msra.mxu0 0.0
        %1510 = vmatpush.msra.mxu0 0.0
        %1511 = vmatpush.msra.mxu0 0.0
        %1512 = vmatpush.msra.mxu0 0.0
        %1513 = vmatpush.msra.mxu0 0.0
        %1514 = vmatpush.msra.mxu0 0.0
        %v1515 = vand.u32 %v1207, 4294901760
        %1516 = vmatpush.msra.mxu0 %v1515
        %v1517 = vand.u32 %v1205, 4294901760
        %1518 = vmatpush.msra.mxu0 %v1517
        %v1519 = vand.u32 %v1203, 4294901760
        %1520 = vmatpush.msra.mxu0 %v1519
        %v1521 = vand.u32 %v1201, 4294901760
        %1522 = vmatpush.msra.mxu0 %v1521
        %v1523 = vand.u32 %v1216, 4294901760
        %v1524 = vsub.f32 %v1216, %v1523
        %v1525 = vand.u32 %v1524, 4294901760
        %1526 = vmatmul.f32.gmra.mxu0 %v1525
        %v1527 = vpop.f32.mrf.mxu0
        %v1528 = vadd.f32 %v1501, %v1527
        %1529 = vdwg.mxu0
        %1530 = vmatpush.msra.mxu0 0.0
        %1531 = vmatpush.msra.mxu0 0.0
        %1532 = vmatpush.msra.mxu0 0.0
        %1533 = vmatpush.msra.mxu0 0.0
        %1534 = vmatpush.msra.mxu0 0.0
        %1535 = vmatpush.msra.mxu0 0.0
        %1536 = vmatpush.msra.mxu0 0.0
        %1537 = vmatpush.msra.mxu0 0.0
        %1538 = vmatpush.msra.mxu0 0.0
        %1539 = vmatpush.msra.mxu0 0.0
        %1540 = vmatpush.msra.mxu0 0.0
        %1541 = vmatpush.msra.mxu0 0.0
        %v1542 = vand.u32 %v1207, 4294901760
        %v1543 = vsub.f32 %v1207, %v1542
        %v1544 = vand.u32 %v1543, 4294901760
        %1545 = vmatpush.msra.mxu0 %v1544
        %v1546 = vand.u32 %v1205, 4294901760
        %v1547 = vsub.f32 %v1205, %v1546
        %v1548 = vand.u32 %v1547, 4294901760
        %1549 = vmatpush.msra.mxu0 %v1548
        %v1550 = vand.u32 %v1203, 4294901760
        %v1551 = vsub.f32 %v1203, %v1550
        %v1552 = vand.u32 %v1551, 4294901760
        %1553 = vmatpush.msra.mxu0 %v1552
        %v1554 = vand.u32 %v1201, 4294901760
        %v1555 = vsub.f32 %v1201, %v1554
        %v1556 = vand.u32 %v1555, 4294901760
        %1557 = vmatpush.msra.mxu0 %v1556
        %v1558 = vand.u32 %v1216, 4294901760
        %1559 = vmatmul.f32.gmra.mxu0 %v1558
        %v1560 = vpop.f32.mrf.mxu0
        %v1561 = vadd.f32 %v1528, %v1560
        %1562 = vdwg.mxu0
        %1563 = vmatpush.msra.mxu0 0.0
        %1564 = vmatpush.msra.mxu0 0.0
        %1565 = vmatpush.msra.mxu0 0.0
        %1566 = vmatpush.msra.mxu0 0.0
        %1567 = vmatpush.msra.mxu0 0.0
        %1568 = vmatpush.msra.mxu0 0.0
        %1569 = vmatpush.msra.mxu0 0.0
        %1570 = vmatpush.msra.mxu0 0.0
        %1571 = vmatpush.msra.mxu0 0.0
        %1572 = vmatpush.msra.mxu0 0.0
        %1573 = vmatpush.msra.mxu0 0.0
        %1574 = vmatpush.msra.mxu0 0.0
        %v1575 = vand.u32 %v1207, 4294901760
        %1576 = vmatpush.msra.mxu0 %v1575
        %v1577 = vand.u32 %v1205, 4294901760
        %1578 = vmatpush.msra.mxu0 %v1577
        %v1579 = vand.u32 %v1203, 4294901760
        %1580 = vmatpush.msra.mxu0 %v1579
        %v1581 = vand.u32 %v1201, 4294901760
        %1582 = vmatpush.msra.mxu0 %v1581
        %v1583 = vand.u32 %v1216, 4294901760
        %1584 = vmatmul.f32.gmra.mxu0 %v1583
        %v1585 = vpop.f32.mrf.mxu0
        %v1586 = vadd.f32 %v1561, %v1585
        %1587 = vdwg.mxu0
        %v1590 = vrot.slane %v1586, 4
        %vm1591 = vcmask 1043456
        %v1592 = vsel %vm1591, %v1401, %v1590
        %1594 = vst [vmem:[%s400] sm:$0x77] %v1592
        %s1595 = sand.u32 %s189, 1
        %s1596 = scalar_lea.sflag [#allocation9], %s1595
        %s1597 = sand.u32 %s189, 1
        %s1598 = smul.addr %s1597, 8
        %s1599 = scalar_lea.vmem [#allocation19], %s1598
        // Predicated region
        $region77: #{_lambda_.2} parent=47 // pred_check
          %p1600 = pneg %p199
        $region78: #{_lambda_.2} parent=47 // pred_check_branch
          %1602 = sbr.rel (%p1600) target = $region80
        $region79: #{_lambda_.2} parent=47 // pred_region
          %s1603 = smul.u32 2, %s29
          %1605 = vsyncadd %s1596, 0
          %s1606 = smul.addr %s1603, 4
          %s1607 = scalar_lea.hbm %s8, %s1606
          %s1609 = sshll.u32 %s1599, 4
          %s1610 = int_to_ptr.vmem [resolvable:$true] %s1609
          %s1611 = sshll.u32 %s1607, 4
          %s1612 = int_to_ptr.hbm [resolvable:$true] %s1611
          %1614 = dma.vmem_to_hbm [thread:$0]  %s1610, 128, %s1612, %s1596
        $region80: #{_lambda_.2} parent=47 // pred_fallthru
          _
      $region48: #{_lambda_.2} parent=5 // pred_fallthru
        _
      %p1615 = scmp.le.s32.totalorder 2, %s24
      // Predicated region
      $region81: #{_lambda_.2} parent=5 // pred_check
        %p1616 = pneg %p1615
      $region82: #{_lambda_.2} parent=5 // pred_check_branch
        %1618 = sbr.rel (%p1616) target = $region84
      $region83: #{_lambda_.2} parent=5 // pred_region
        %s1619 = ssub.s32 %s24, 2
        // Predicated region
        $region85: #{_lambda_.2} parent=83 // pred_check
          %p1620 = pneg %p205
        $region86: #{_lambda_.2} parent=83 // pred_check_branch
          %1622 = sbr.rel (%p1620) target = $region88
        $region87: #{_lambda_.2} parent=83 // pred_region
          %s1623 = sand.u32 %s190, 1
          %s1624 = scalar_lea.sflag [#allocation9], %s1623
          %s1625 = sand.u32 %s190, 1
          %s1626 = smul.addr %s1625, 8
          %s1627 = scalar_lea.vmem [#allocation19], %s1626
          %1629 = dma.done %s1624, 128
        $region88: #{_lambda_.2} parent=83 // pred_fallthru
          _
      $region84: #{_lambda_.2} parent=5 // pred_fallthru
        _
    $region6: #{_lambda_.2} parent=1 // loop_footer
      %s28 = sadd.s32 1, %s24
    $region7: #{_lambda_.2} parent=1 // loop_footer_branch
      %23 = sbr.rel target = $region3
    $region8: #{_lambda_.2} parent=1 // loop_exit
      _
    %1630 = vsyncpa [#allocation8], 1
    %s1631 = scalar_lea.sflag [#allocation8], 1
    %1632 = vsyncpa %s1631, 1
    %1633 = vsyncpa [#allocation11], 1
    %1634 = vsyncpa [#allocation14], 1
    %1635 = vsyncpa [#allocation17], 1
    %1636 = vsyncpa [#allocation9], 1
    %s1637 = scalar_lea.sflag [#allocation9], 1
    %1638 = vsyncpa %s1637, 1

</llo_original>
